<compile_context>
chip_gen: v7x
topology: tpu7x:2x2x1
jax: 0.10.0
libtpu: 0.0.40
codegen_flags: <defaults>
</compile_context>

<pallas_src>
import jax
import jax.numpy as jnp
import numpy as np
from jax.experimental import pallas as pl
from jax.experimental.pallas import tpu as pltpu


def _tcn_gcn_kernel(xpm_ref, xtf_ref, xmv_ref, w3t_ref, wdrt_ref, w2f_ref,
                    w4kc_ref, wtk_ref, out_ref):
    S = w4kc_ref.shape[0]
    _, T, VC = out_ref.shape                 # VC = V * Cout (lane-dense, 256)
    V = xmv_ref.shape[1]
    VR = w2f_ref.shape[1] // S               # V * rel_channels (128)

    xpm = xpm_ref[0]                         # (T*V, Cin+1)   points-major (+ones col)
    xtf = xtf_ref[0]                         # (T+1, V*Cin+1) (t, joint*chan) + mean row
    xmv = xmv_ref[0]                         # (V, Cin+1)     time-mean, joints in sublanes

    # M1: the S conv3 branches (BN scale + bias folded), lane-tiled over the
    # output joint u -> columns (subset, u, c); trailing dim multiple of 128.
    x3t = jnp.dot(xpm, w3t_ref[...], preferred_element_type=jnp.float32)   # (T*V, S*VC)

    # M2: down + outer-residual 1x1 convs already in (t, u*C+c) layout, plus
    # the CTRGC conv1 relation features on the time-mean row (all biases and
    # BN shifts folded into the last weight row).
    m2 = jnp.dot(xtf, wdrt_ref[...], preferred_element_type=jnp.float32)   # (T+1, 2*VC+S*VR)
    dwn = m2[:T, :VC]                         # (T, V*C)  down branch (+bn_gcn shift)
    res = m2[:T, VC:2 * VC]                   # (T, V*C)  outer residual (+tcn1 bias)
    t1 = m2[T:T + 1, 2 * VC:]                 # (1, S*V*R) x1m[r,u] at lane u*R+r

    # M3: CTRGC conv2 on the time-mean, lane-tiled over u.
    x2t = jnp.dot(xmv, w2f_ref[...], preferred_element_type=jnp.float32)   # (V, S*V*R)

    y = jnp.zeros((T, VC), jnp.float32)
    for i in range(S):                        # num_subset: small & static -> unrolled
        # d[v, u*R+r] = tanh(x1m[r,u] - x2m[r,v])   (2 dense vregs)
        d = jnp.tanh(t1[:, i * VR:(i + 1) * VR] - x2t[:, i * VR:(i + 1) * VR])
        w4 = w4kc_ref[i]                      # (V*R + V, V*C): [kron(I_V,alpha*W4^T); A+alpha*b4]
        # adj[v, u*C+c] = A[u,v] + alpha*(conv4(d))[c,u,v]
        adj = jnp.dot(d, w4[:VR, :], preferred_element_type=jnp.float32) + w4[VR:, :]
        # einsum('ncuv,nctv->nctu'): reduce over v across sublanes, (u,c) dense in lanes.
        x3i = x3t[:, i * VC:(i + 1) * VC].reshape(T, V, VC)               # (T, Vv, V*C)
        y = y + jnp.sum(x3i * adj[None, :, :], axis=1)                    # (T, V*C)

    # unit_gcn: bn + down-residual + relu (all affine terms pre-folded into dwn)
    g = jnp.maximum(y + dwn, 0.0)
    # unit_tcn1: 1x1 ConvTranspose + BN as block-diag kron(I_V, Wt_eff); its bias
    # is folded into `res`.  Final relu of TCN_GCN_unit1.
    h = jnp.dot(g, wtk_ref[...], preferred_element_type=jnp.float32)      # (T, V*C)
    out_ref[0] = jnp.maximum(h + res, 0.0)


def tcn_gcn_unit1_forward(x_nchw, p):
    N, Cin, T, V = x_nchw.shape
    S = p["A"].shape[0]
    R = p["W1"].shape[1]
    Cout = p["W3"].shape[1]
    VC, VR = V * Cout, V * R
    eps = 1e-5
    f32 = jnp.float32

    # ---- eval-mode BN folding (running stats at nn.BatchNorm2d init) ----
    def bn_fold(gamma, beta):
        return gamma / jnp.sqrt(1.0 + eps), beta
    s_g, b_g = bn_fold(p["bn_gcn_g"], p["bn_gcn_b"])
    s_d, b_d = bn_fold(p["bn_d_g"], p["bn_d_b"])
    s_t, b_t = bn_fold(p["bn_t_g"], p["bn_t_b"])
    s_r, b_r = bn_fold(p["bn_r_g"], p["bn_r_b"])
    alpha = p["alpha"].astype(f32)
    eyeV = jnp.eye(V, dtype=f32)

    # ---- activations (glue): points-major and (t, joint*chan) forms, with a
    #      ones column so every conv bias rides inside the matmuls ----
    x_tvc = jnp.transpose(x_nchw, (0, 2, 3, 1)).astype(f32)               # (N,T,V,Cin)
    x_pm = jnp.concatenate(
        [x_tvc.reshape(N, T * V, Cin), jnp.ones((N, T * V, 1), f32)], axis=-1)   # (N,TV,Cin+1)
    x_tf = jnp.concatenate(
        [x_tvc.reshape(N, T, V * Cin), jnp.ones((N, T, 1), f32)], axis=-1)       # (N,T,V*Cin+1)
    x_tfm = jnp.concatenate([x_tf, jnp.mean(x_tf, axis=1, keepdims=True)], axis=1)  # (N,T+1,.)
    xm = jnp.concatenate(
        [jnp.mean(x_tvc, axis=1), jnp.ones((N, V, 1), f32)], axis=-1)             # (N,V,Cin+1)

    # ---- conv3 of each CTRGC subset: BN-scale + bias folded, tiled over u ----
    w3_aug = jnp.concatenate(
        [jnp.transpose(p["W3"] * s_g[None, :, None], (0, 2, 1)),
         (p["b3"] * s_g[None, :])[:, None, :]], axis=1)                   # (S, Cin+1, Cout)
    w3t = jnp.transpose(jnp.tile(w3_aug, (1, 1, V)), (1, 0, 2)).reshape(Cin + 1, S * VC)

    # ---- down / outer-residual 1x1 convs as kron(I_V, W_eff), biases folded;
    #      the unit_gcn BN shift rides with `down`, the tcn1 bias with `res` ----
    wd_eff = (p["Wd"] * s_d[:, None]).T                                   # (Cin, Cout)
    wr_eff = (p["Wr"] * s_r[:, None]).T                                   # (Cin, Cout)
    bd_lane = jnp.tile(s_d * p["bd"] + b_d + b_g, (V,))                   # (V*Cout,)
    br_lane = jnp.tile(s_r * p["br"] + b_r + s_t * p["bt"] + b_t, (V,))   # (V*Cout,)
    wd_kron = jnp.concatenate([jnp.kron(eyeV, wd_eff), bd_lane[None, :]], axis=0)
    wr_kron = jnp.concatenate([jnp.kron(eyeV, wr_eff), br_lane[None, :]], axis=0)

    # ---- CTRGC conv1 (on time-mean row) as kron(I_V, W1^T) per subset ----
    w1k_list = []
    for i in range(S):
        w1k = jnp.kron(eyeV, p["W1"][i].T)                                # (V*Cin, V*R)
        w1k_list.append(jnp.concatenate(
            [w1k, jnp.tile(p["b1"][i], (V,))[None, :]], axis=0))          # (V*Cin+1, V*R)
    wdrt1 = jnp.concatenate([wd_kron, wr_kron] + w1k_list, axis=1)        # (V*Cin+1, 2*VC+S*VR)

    # ---- CTRGC conv2 (on time-mean), lane-tiled over u ----
    w2_aug = jnp.concatenate(
        [jnp.transpose(p["W2"], (0, 2, 1)), p["b2"][:, None, :]], axis=1) # (S, Cin+1, R)
    w2f = jnp.transpose(jnp.tile(w2_aug, (1, 1, V)), (1, 0, 2)).reshape(Cin + 1, S * VR)

    # ---- CTRGC conv4 (alpha folded) as kron(I_V, alpha*W4^T), plus the
    #      constant part of the adjacency (A + alpha*b4) appended below it ----
    w4kc_list = []
    for i in range(S):
        w4k = jnp.kron(eyeV, alpha * p["W4"][i].T)                        # (V*R, V*Cout)
        a_exp = jnp.repeat(p["A"][i].T, Cout, axis=1)                     # [v,u*C+c] = A[u,v]
        adj_c = a_exp + jnp.tile(alpha * p["b4"][i], (V,))[None, :]
        w4kc_list.append(jnp.concatenate([w4k, adj_c], axis=0))           # (V*R+V, V*Cout)
    w4kc = jnp.stack(w4kc_list)                                           # (S, V*R+V, V*Cout)

    # ---- unit_tcn1 ConvTranspose 1x1 (weight indexed [in,out]) as kron ----
    wtk = jnp.kron(eyeV, p["Wt"] * s_t[None, :])                          # (V*Cout, V*Cout)

    const2 = lambda n: (0, 0)
    const3 = lambda n: (0, 0, 0)

    out = pl.pallas_call(
        _tcn_gcn_kernel,
        grid=(N,),
        in_specs=[
            pl.BlockSpec((1, T * V, Cin + 1), lambda n: (n, 0, 0)),
            pl.BlockSpec((1, T + 1, V * Cin + 1), lambda n: (n, 0, 0)),
            pl.BlockSpec((1, V, Cin + 1), lambda n: (n, 0, 0)),
            pl.BlockSpec((Cin + 1, S * VC), const2),
            pl.BlockSpec((V * Cin + 1, 2 * VC + S * VR), const2),
            pl.BlockSpec((Cin + 1, S * VR), const2),
            pl.BlockSpec((S, VR + V, VC), const3),
            pl.BlockSpec((VC, VC), const2),
        ],
        out_specs=pl.BlockSpec((1, T, VC), lambda n: (n, 0, 0)),
        out_shape=jax.ShapeDtypeStruct((N, T, VC), jnp.float32),
        compiler_params=pltpu.CompilerParams(dimension_semantics=("parallel",)),
    )(x_pm, x_tfm, xm, w3t, wdrt1, w2f, w4kc, wtk)

    # (t, u*C+c) -> NCHW (glue on a tiny array)
    return jnp.transpose(out.reshape(N, T, V, Cout), (0, 3, 1, 2))


# ----------------------- pure-JAX reference (for check) -----------------------
def reference_forward(x, p):
    eps = 1e-5

    def conv1x1(xx, W, b):                        # W: (Cout, Cin), xx: (N,C,T,V)
        return jnp.einsum('oc,nctv->notv', W, xx) + b[None, :, None, None]

    def bn(xx, g, b):                             # eval-mode BN, init running stats
        return xx * (g / jnp.sqrt(1.0 + eps))[None, :, None, None] + b[None, :, None, None]

    A, alpha = p["A"], p["alpha"]
    y = None
    for i in range(A.shape[0]):
        x1 = conv1x1(x, p["W1"][i], p["b1"][i]).mean(axis=2)     # (N,R,V)
        x2 = conv1x1(x, p["W2"][i], p["b2"][i]).mean(axis=2)     # (N,R,V)
        x3 = conv1x1(x, p["W3"][i], p["b3"][i])                  # (N,Cout,T,V)
        d = jnp.tanh(x1[..., :, None] - x2[..., None, :])        # (N,R,V,V)
        a1 = jnp.einsum('or,nruv->nouv', p["W4"][i], d) + p["b4"][i][None, :, None, None]
        a1 = a1 * alpha + A[i][None, None]
        z = jnp.einsum('ncuv,nctv->nctu', a1, x3)
        y = z if y is None else y + z
    y = bn(y, p["bn_gcn_g"], p["bn_gcn_b"])
    y = y + bn(conv1x1(x, p["Wd"], p["bd"]), p["bn_d_g"], p["bn_d_b"])
    g = jnp.maximum(y, 0.0)
    h = jnp.einsum('io,nitv->notv', p["Wt"], g) + p["bt"][None, :, None, None]
    h = bn(h, p["bn_t_g"], p["bn_t_b"])
    r = bn(conv1x1(x, p["Wr"], p["br"]), p["bn_r_g"], p["bn_r_b"])
    return jnp.maximum(h + r, 0.0)


# ------------------------- deterministic parameter init -----------------------
def init_params(key, in_channels, out_channels, num_subset, V):
    # CTRGC: in_channels == 3 -> rel_channels = 8
    R = 8 if in_channels in (3, 9) else in_channels // 8
    ks = jax.random.split(key, 32)

    def conv_w(k, cout, cin):                     # kaiming-like fan_out std
        return ((2.0 / cout) ** 0.5) * jax.random.normal(k, (cout, cin), jnp.float32)

    def conv_b(k, cout):                          # module init is 0; small values keep path exercised
        return 0.1 * jax.random.normal(k, (cout,), jnp.float32)

    p = {}
    p["A"] = 0.5 * jax.random.normal(ks[0], (num_subset, V, V), jnp.float32)
    p["W1"] = jnp.stack([conv_w(ks[1 + i], R, in_channels) for i in range(num_subset)])
    p["b1"] = jnp.stack([conv_b(ks[4 + i], R) for i in range(num_subset)])
    p["W2"] = jnp.stack([conv_w(ks[7 + i], R, in_channels) for i in range(num_subset)])
    p["b2"] = jnp.stack([conv_b(ks[10 + i], R) for i in range(num_subset)])
    p["W3"] = jnp.stack([conv_w(ks[13 + i], out_channels, in_channels) for i in range(num_subset)])
    p["b3"] = jnp.stack([conv_b(ks[16 + i], out_channels) for i in range(num_subset)])
    p["W4"] = jnp.stack([conv_w(ks[19 + i], out_channels, R) for i in range(num_subset)])
    p["b4"] = jnp.stack([conv_b(ks[22 + i], out_channels) for i in range(num_subset)])
    # module init is alpha = 0 (degenerate); nonzero keeps the CTR refinement branch alive
    p["alpha"] = jnp.asarray(0.5, jnp.float32)
    p["Wd"] = conv_w(ks[25], out_channels, in_channels); p["bd"] = conv_b(ks[26], out_channels)
    p["Wt"] = conv_w(ks[27], out_channels, out_channels); p["bt"] = conv_b(ks[28], out_channels)
    p["Wr"] = conv_w(ks[29], out_channels, in_channels); p["br"] = conv_b(ks[30], out_channels)
    # BN affine params (module init: unit_gcn.bn gamma=1e-6, others 1; we use 1.0 everywhere
    # so the GCN branch stays numerically non-degenerate).
    ones = jnp.ones((out_channels,), jnp.float32)
    zeros = jnp.zeros((out_channels,), jnp.float32)
    p["bn_gcn_g"], p["bn_gcn_b"] = ones, zeros
    p["bn_d_g"], p["bn_d_b"] = ones, zeros
    p["bn_t_g"], p["bn_t_b"] = ones, zeros
    p["bn_r_g"], p["bn_r_b"] = ones, zeros
    return p


if __name__ == "__main__":
    N, Cin, T, V = 2, 3, 8, 16          # NCHW = (batch, channels, time, joints)
    Cout, S = 16, 3                     # out_channels, num graph subsets

    key = jax.random.PRNGKey(0)
    kx, kp = jax.random.split(key)
    x = jax.random.normal(kx, (N, Cin, T, V), jnp.float32)
    params = init_params(kp, Cin, Cout, S, V)

    out = jax.block_until_ready(tcn_gcn_unit1_forward(x, params))
    ref = jax.block_until_ready(reference_forward(x, params))

    assert out.shape == (N, Cout, T, V), out.shape
    np.testing.assert_allclose(np.asarray(out), np.asarray(ref), rtol=1e-3, atol=1e-3)
    print("KERNEL_OK")
</pallas_src>

<mosaic_0001>
module attributes {stable_mosaic.version = 11 : i64} {
  func.func @_tcn_gcn_kernel(%arg0: i32, %arg1: memref<1x128x4xf32, #tpu.memory_space<vmem>>, %arg2: memref<1x9x49xf32, #tpu.memory_space<vmem>>, %arg3: memref<1x16x4xf32, #tpu.memory_space<vmem>>, %arg4: memref<4x768xf32, #tpu.memory_space<vmem>>, %arg5: memref<49x896xf32, #tpu.memory_space<vmem>>, %arg6: memref<4x384xf32, #tpu.memory_space<vmem>>, %arg7: memref<3x144x256xf32, #tpu.memory_space<vmem>>, %arg8: memref<256x256xf32, #tpu.memory_space<vmem>>, %arg9: memref<1x8x256xf32, #tpu.memory_space<vmem>>) attributes {dimension_semantics = [#tpu.dimension_semantics<parallel>], iteration_bounds = array<i64: 2>, scalar_prefetch = 0 : i64, scratch_operands = 0 : i64, tpu.core_type = #tpu.core_type<tc>, window_params = [{transform_indices = @transform_0, window_bounds = array<i64: 1, 128, 4>}, {transform_indices = @transform_1, window_bounds = array<i64: 1, 9, 49>}, {transform_indices = @transform_2, window_bounds = array<i64: 1, 16, 4>}, {pipeline_mode = #tpu.pipeline_mode<synchronous>, transform_indices = @transform_3, window_bounds = array<i64: 4, 768>}, {pipeline_mode = #tpu.pipeline_mode<synchronous>, transform_indices = @transform_4, window_bounds = array<i64: 49, 896>}, {pipeline_mode = #tpu.pipeline_mode<synchronous>, transform_indices = @transform_5, window_bounds = array<i64: 4, 384>}, {pipeline_mode = #tpu.pipeline_mode<synchronous>, transform_indices = @transform_6, window_bounds = array<i64: 3, 144, 256>}, {pipeline_mode = #tpu.pipeline_mode<synchronous>, transform_indices = @transform_7, window_bounds = array<i64: 256, 256>}, {transform_indices = @transform_8, window_bounds = array<i64: 1, 8, 256>}]} {
    %c0 = arith.constant 0 : index
    %c0_0 = arith.constant 0 : index
    %c0_1 = arith.constant 0 : index
    %0 = vector.load %arg1[%c0, %c0_0, %c0_1] : memref<1x128x4xf32, #tpu.memory_space<vmem>>, vector<1x128x4xf32>
    %1 = vector.shape_cast %0 : vector<1x128x4xf32> to vector<128x4xf32>
    %c0_2 = arith.constant 0 : index
    %c0_3 = arith.constant 0 : index
    %c0_4 = arith.constant 0 : index
    %2 = vector.load %arg2[%c0_2, %c0_3, %c0_4] : memref<1x9x49xf32, #tpu.memory_space<vmem>>, vector<1x9x49xf32>
    %3 = vector.shape_cast %2 : vector<1x9x49xf32> to vector<9x49xf32>
    %c0_5 = arith.constant 0 : index
    %c0_6 = arith.constant 0 : index
    %c0_7 = arith.constant 0 : index
    %4 = vector.load %arg3[%c0_5, %c0_6, %c0_7] : memref<1x16x4xf32, #tpu.memory_space<vmem>>, vector<1x16x4xf32>
    %5 = vector.shape_cast %4 : vector<1x16x4xf32> to vector<16x4xf32>
    %c0_8 = arith.constant 0 : index
    %c0_9 = arith.constant 0 : index
    %6 = vector.load %arg4[%c0_8, %c0_9] : memref<4x768xf32, #tpu.memory_space<vmem>>, vector<4x768xf32>
    %cst = arith.constant dense<0.000000e+00> : vector<128x768xf32>
    %7 = tpu.matmul %1, %6, %cst {dimension_numbers = #tpu.dot_dimension_numbers<[1], [0], [0], [1], [0, 0, 1, 1], [], []>} : vector<128x4xf32>, vector<4x768xf32>, vector<128x768xf32> -> vector<128x768xf32>
    %c0_10 = arith.constant 0 : index
    %c0_11 = arith.constant 0 : index
    %8 = vector.load %arg5[%c0_10, %c0_11] : memref<49x896xf32, #tpu.memory_space<vmem>>, vector<49x896xf32>
    %cst_12 = arith.constant dense<0.000000e+00> : vector<9x896xf32>
    %9 = tpu.matmul %3, %8, %cst_12 {dimension_numbers = #tpu.dot_dimension_numbers<[1], [0], [0], [1], [0, 0, 1, 1], [], []>} : vector<9x49xf32>, vector<49x896xf32>, vector<9x896xf32> -> vector<9x896xf32>
    %10 = vector.extract_strided_slice %9 {offsets = [0, 0], sizes = [8, 256], strides = [1, 1]} : vector<9x896xf32> to vector<8x256xf32>
    %11 = vector.extract_strided_slice %9 {offsets = [0, 256], sizes = [8, 256], strides = [1, 1]} : vector<9x896xf32> to vector<8x256xf32>
    %12 = vector.extract_strided_slice %9 {offsets = [8, 512], sizes = [1, 384], strides = [1, 1]} : vector<9x896xf32> to vector<1x384xf32>
    %c0_13 = arith.constant 0 : index
    %c0_14 = arith.constant 0 : index
    %13 = vector.load %arg6[%c0_13, %c0_14] : memref<4x384xf32, #tpu.memory_space<vmem>>, vector<4x384xf32>
    %cst_15 = arith.constant dense<0.000000e+00> : vector<16x384xf32>
    %14 = tpu.matmul %5, %13, %cst_15 {dimension_numbers = #tpu.dot_dimension_numbers<[1], [0], [0], [1], [0, 0, 1, 1], [], []>} : vector<16x4xf32>, vector<4x384xf32>, vector<16x384xf32> -> vector<16x384xf32>
    %cst_16 = arith.constant 0.000000e+00 : f32
    %15 = vector.broadcast %cst_16 : f32 to vector<8x256xf32>
    %16 = vector.extract_strided_slice %12 {offsets = [0, 0], sizes = [1, 128], strides = [1, 1]} : vector<1x384xf32> to vector<1x128xf32>
    %17 = vector.extract_strided_slice %14 {offsets = [0, 0], sizes = [16, 128], strides = [1, 1]} : vector<16x384xf32> to vector<16x128xf32>
    %18 = vector.broadcast %16 : vector<1x128xf32> to vector<16x128xf32>
    %19 = arith.subf %18, %17 : vector<16x128xf32>
    %20 = math.tanh %19 : vector<16x128xf32>
    %c0_17 = arith.constant 0 : index
    %c0_18 = arith.constant 0 : index
    %c0_19 = arith.constant 0 : index
    %21 = vector.load %arg7[%c0_17, %c0_18, %c0_19] : memref<3x144x256xf32, #tpu.memory_space<vmem>>, vector<1x144x256xf32>
    %22 = vector.shape_cast %21 : vector<1x144x256xf32> to vector<144x256xf32>
    %23 = vector.extract_strided_slice %22 {offsets = [0, 0], sizes = [128, 256], strides = [1, 1]} : vector<144x256xf32> to vector<128x256xf32>
    %cst_20 = arith.constant dense<0.000000e+00> : vector<16x256xf32>
    %24 = tpu.matmul %20, %23, %cst_20 {dimension_numbers = #tpu.dot_dimension_numbers<[1], [0], [0], [1], [0, 0, 1, 1], [], []>} : vector<16x128xf32>, vector<128x256xf32>, vector<16x256xf32> -> vector<16x256xf32>
    %25 = vector.extract_strided_slice %22 {offsets = [128, 0], sizes = [16, 256], strides = [1, 1]} : vector<144x256xf32> to vector<16x256xf32>
    %26 = arith.addf %24, %25 : vector<16x256xf32>
    %27 = vector.extract_strided_slice %7 {offsets = [0, 0], sizes = [128, 256], strides = [1, 1]} : vector<128x768xf32> to vector<128x256xf32>
    %28 = vector.shape_cast %27 : vector<128x256xf32> to vector<8x16x256xf32>
    %29 = vector.shape_cast %26 : vector<16x256xf32> to vector<1x16x256xf32>
    %30 = vector.broadcast %29 : vector<1x16x256xf32> to vector<8x16x256xf32>
    %31 = arith.mulf %28, %30 : vector<8x16x256xf32>
    %cst_21 = arith.constant dense<0.000000e+00> : vector<8x256xf32>
    %32 = vector.multi_reduction <add>, %31, %cst_21 [1] : vector<8x16x256xf32> to vector<8x256xf32>
    %33 = arith.addf %15, %32 : vector<8x256xf32>
    %34 = vector.extract_strided_slice %12 {offsets = [0, 128], sizes = [1, 128], strides = [1, 1]} : vector<1x384xf32> to vector<1x128xf32>
    %35 = vector.extract_strided_slice %14 {offsets = [0, 128], sizes = [16, 128], strides = [1, 1]} : vector<16x384xf32> to vector<16x128xf32>
    %36 = vector.broadcast %34 : vector<1x128xf32> to vector<16x128xf32>
    %37 = arith.subf %36, %35 : vector<16x128xf32>
    %38 = math.tanh %37 : vector<16x128xf32>
    %c1 = arith.constant 1 : index
    %c0_22 = arith.constant 0 : index
    %c0_23 = arith.constant 0 : index
    %39 = vector.load %arg7[%c1, %c0_22, %c0_23] : memref<3x144x256xf32, #tpu.memory_space<vmem>>, vector<1x144x256xf32>
    %40 = vector.shape_cast %39 : vector<1x144x256xf32> to vector<144x256xf32>
    %41 = vector.extract_strided_slice %40 {offsets = [0, 0], sizes = [128, 256], strides = [1, 1]} : vector<144x256xf32> to vector<128x256xf32>
    %cst_24 = arith.constant dense<0.000000e+00> : vector<16x256xf32>
    %42 = tpu.matmul %38, %41, %cst_24 {dimension_numbers = #tpu.dot_dimension_numbers<[1], [0], [0], [1], [0, 0, 1, 1], [], []>} : vector<16x128xf32>, vector<128x256xf32>, vector<16x256xf32> -> vector<16x256xf32>
    %43 = vector.extract_strided_slice %40 {offsets = [128, 0], sizes = [16, 256], strides = [1, 1]} : vector<144x256xf32> to vector<16x256xf32>
    %44 = arith.addf %42, %43 : vector<16x256xf32>
    %45 = vector.extract_strided_slice %7 {offsets = [0, 256], sizes = [128, 256], strides = [1, 1]} : vector<128x768xf32> to vector<128x256xf32>
    %46 = vector.shape_cast %45 : vector<128x256xf32> to vector<8x16x256xf32>
    %47 = vector.shape_cast %44 : vector<16x256xf32> to vector<1x16x256xf32>
    %48 = vector.broadcast %47 : vector<1x16x256xf32> to vector<8x16x256xf32>
    %49 = arith.mulf %46, %48 : vector<8x16x256xf32>
    %cst_25 = arith.constant dense<0.000000e+00> : vector<8x256xf32>
    %50 = vector.multi_reduction <add>, %49, %cst_25 [1] : vector<8x16x256xf32> to vector<8x256xf32>
    %51 = arith.addf %33, %50 : vector<8x256xf32>
    %52 = vector.extract_strided_slice %12 {offsets = [0, 256], sizes = [1, 128], strides = [1, 1]} : vector<1x384xf32> to vector<1x128xf32>
    %53 = vector.extract_strided_slice %14 {offsets = [0, 256], sizes = [16, 128], strides = [1, 1]} : vector<16x384xf32> to vector<16x128xf32>
    %54 = vector.broadcast %52 : vector<1x128xf32> to vector<16x128xf32>
    %55 = arith.subf %54, %53 : vector<16x128xf32>
    %56 = math.tanh %55 : vector<16x128xf32>
    %c2 = arith.constant 2 : index
    %c0_26 = arith.constant 0 : index
    %c0_27 = arith.constant 0 : index
    %57 = vector.load %arg7[%c2, %c0_26, %c0_27] : memref<3x144x256xf32, #tpu.memory_space<vmem>>, vector<1x144x256xf32>
    %58 = vector.shape_cast %57 : vector<1x144x256xf32> to vector<144x256xf32>
    %59 = vector.extract_strided_slice %58 {offsets = [0, 0], sizes = [128, 256], strides = [1, 1]} : vector<144x256xf32> to vector<128x256xf32>
    %cst_28 = arith.constant dense<0.000000e+00> : vector<16x256xf32>
    %60 = tpu.matmul %56, %59, %cst_28 {dimension_numbers = #tpu.dot_dimension_numbers<[1], [0], [0], [1], [0, 0, 1, 1], [], []>} : vector<16x128xf32>, vector<128x256xf32>, vector<16x256xf32> -> vector<16x256xf32>
    %61 = vector.extract_strided_slice %58 {offsets = [128, 0], sizes = [16, 256], strides = [1, 1]} : vector<144x256xf32> to vector<16x256xf32>
    %62 = arith.addf %60, %61 : vector<16x256xf32>
    %63 = vector.extract_strided_slice %7 {offsets = [0, 512], sizes = [128, 256], strides = [1, 1]} : vector<128x768xf32> to vector<128x256xf32>
    %64 = vector.shape_cast %63 : vector<128x256xf32> to vector<8x16x256xf32>
    %65 = vector.shape_cast %62 : vector<16x256xf32> to vector<1x16x256xf32>
    %66 = vector.broadcast %65 : vector<1x16x256xf32> to vector<8x16x256xf32>
    %67 = arith.mulf %64, %66 : vector<8x16x256xf32>
    %cst_29 = arith.constant dense<0.000000e+00> : vector<8x256xf32>
    %68 = vector.multi_reduction <add>, %67, %cst_29 [1] : vector<8x16x256xf32> to vector<8x256xf32>
    %69 = arith.addf %51, %68 : vector<8x256xf32>
    %70 = arith.addf %69, %10 : vector<8x256xf32>
    %cst_30 = arith.constant 0.000000e+00 : f32
    %71 = vector.broadcast %cst_30 : f32 to vector<8x256xf32>
    %72 = arith.maximumf %70, %71 : vector<8x256xf32>
    %c0_31 = arith.constant 0 : index
    %c0_32 = arith.constant 0 : index
    %73 = vector.load %arg8[%c0_31, %c0_32] : memref<256x256xf32, #tpu.memory_space<vmem>>, vector<256x256xf32>
    %cst_33 = arith.constant dense<0.000000e+00> : vector<8x256xf32>
    %74 = tpu.matmul %72, %73, %cst_33 {dimension_numbers = #tpu.dot_dimension_numbers<[1], [0], [0], [1], [0, 0, 1, 1], [], []>} : vector<8x256xf32>, vector<256x256xf32>, vector<8x256xf32> -> vector<8x256xf32>
    %75 = arith.addf %74, %11 : vector<8x256xf32>
    %cst_34 = arith.constant 0.000000e+00 : f32
    %76 = vector.broadcast %cst_34 : f32 to vector<8x256xf32>
    %77 = arith.maximumf %75, %76 : vector<8x256xf32>
    %c0_35 = arith.constant 0 : index
    %c0_36 = arith.constant 0 : index
    %c0_37 = arith.constant 0 : index
    %78 = vector.load %arg9[%c0_35, %c0_36, %c0_37] : memref<1x8x256xf32, #tpu.memory_space<vmem>>, vector<1x8x256xf32>
    %79 = vector.shape_cast %78 : vector<1x8x256xf32> to vector<8x256xf32>
    %80 = vector.shape_cast %77 : vector<8x256xf32> to vector<1x8x256xf32>
    tpu.vector_store %arg9[%c0_35, %c0_36, %c0_37], %80 {strides = array<i32>} : memref<1x8x256xf32, #tpu.memory_space<vmem>>, vector<1x8x256xf32>,
    return
  }
  func.func @transform_0(%arg0: i32) -> (i32, i32, i32) {
    %c0_i32 = arith.constant 0 : i32
    %c0_i32_0 = arith.constant 0 : i32
    %c0_i32_1 = arith.constant 0 : i32
    return %arg0, %c0_i32, %c0_i32_0 : i32, i32, i32
  }
  func.func @transform_1(%arg0: i32) -> (i32, i32, i32) {
    %c0_i32 = arith.constant 0 : i32
    %c0_i32_0 = arith.constant 0 : i32
    %c0_i32_1 = arith.constant 0 : i32
    return %arg0, %c0_i32, %c0_i32_0 : i32, i32, i32
  }
  func.func @transform_2(%arg0: i32) -> (i32, i32, i32) {
    %c0_i32 = arith.constant 0 : i32
    %c0_i32_0 = arith.constant 0 : i32
    %c0_i32_1 = arith.constant 0 : i32
    return %arg0, %c0_i32, %c0_i32_0 : i32, i32, i32
  }
  func.func @transform_3(%arg0: i32) -> (i32, i32) {
    %c0_i32 = arith.constant 0 : i32
    %c0_i32_0 = arith.constant 0 : i32
    %c0_i32_1 = arith.constant 0 : i32
    return %c0_i32, %c0_i32_0 : i32, i32
  }
  func.func @transform_4(%arg0: i32) -> (i32, i32) {
    %c0_i32 = arith.constant 0 : i32
    %c0_i32_0 = arith.constant 0 : i32
    %c0_i32_1 = arith.constant 0 : i32
    return %c0_i32, %c0_i32_0 : i32, i32
  }
  func.func @transform_5(%arg0: i32) -> (i32, i32) {
    %c0_i32 = arith.constant 0 : i32
    %c0_i32_0 = arith.constant 0 : i32
    %c0_i32_1 = arith.constant 0 : i32
    return %c0_i32, %c0_i32_0 : i32, i32
  }
  func.func @transform_6(%arg0: i32) -> (i32, i32, i32) {
    %c0_i32 = arith.constant 0 : i32
    %c0_i32_0 = arith.constant 0 : i32
    %c0_i32_1 = arith.constant 0 : i32
    %c0_i32_2 = arith.constant 0 : i32
    return %c0_i32, %c0_i32_0, %c0_i32_1 : i32, i32, i32
  }
  func.func @transform_7(%arg0: i32) -> (i32, i32) {
    %c0_i32 = arith.constant 0 : i32
    %c0_i32_0 = arith.constant 0 : i32
    %c0_i32_1 = arith.constant 0 : i32
    return %c0_i32, %c0_i32_0 : i32, i32
  }
  func.func @transform_8(%arg0: i32) -> (i32, i32, i32) {
    %c0_i32 = arith.constant 0 : i32
    %c0_i32_0 = arith.constant 0 : i32
    %c0_i32_1 = arith.constant 0 : i32
    return %arg0, %c0_i32, %c0_i32_0 : i32, i32, i32
  }
}

</mosaic_0001>

<llo_original>
// kernel: tpu_custom_call.1
$region0: #{tpu_custom_call.1}
  #allocation0 [shape = 'u32[]', space=smem, size = 0x4, offset = 0x4, fixed_abs, tag = 'smem constant byte address 0x4 - core index']
  #allocation1 [shape = 'u32[144,128]{1,0:T(1,128)}', space=vmem, size = 0x12000, scoped, tag = 'internal scratch']
  %s0 = inlined_call_operand.vmem [shape: f32[2,128,4], index: 0, kind: input, shape index: {}]
  %s1 = inlined_call_operand.vmem [shape: f32[2,9,49], index: 1, kind: input, shape index: {}]
  %s2 = inlined_call_operand.vmem [shape: f32[2,16,4], index: 2, kind: input, shape index: {}]
  %s3 = inlined_call_operand.vmem [shape: f32[4,768], index: 3, kind: input, shape index: {}]
  %s4 = inlined_call_operand.hbm [shape: f32[49,896], index: 4, kind: input, shape index: {}]
  %s5 = inlined_call_operand.vmem [shape: f32[4,384], index: 5, kind: input, shape index: {}]
  %s6 = inlined_call_operand.hbm [shape: f32[3,144,256], index: 6, kind: input, shape index: {}]
  %s7 = inlined_call_operand.hbm [shape: f32[256,256], index: 7, kind: input, shape index: {}]
  %s8 = inlined_call_operand.hbm [shape: f32[2,8,256], index: 8, kind: output, shape index: {}]
  %s9 = sld [smem:[#allocation0]]
  $region77: #{tpu_custom_call.1} parent=0
    _
  %s11 = ssub.s32 1, %s9
  %s12 = scalar_select 0, %s11, %s9
  $region1: #{tpu_custom_call.1} parent=0
    #allocation2 [shape = 'u8[200704]{0}', space=vmem, size = 0x31000, scoped, tag = 'input window, operand 4, single buffered']
    #allocation3 [shape = 's32[2]{0}', space=sflag, size = 0x8, scoped, tag = 'scoped memory for tpu_custom_call.1']
    #allocation4 [shape = 's32[2]{0}', space=sflag, size = 0x8, scoped, tag = 'scoped memory for tpu_custom_call.1']
    #allocation5 [shape = 'u8[442368]{0}', space=vmem, size = 0x6c000, scoped, tag = 'input window, operand 6, single buffered']
    #allocation6 [shape = 's32[1]{0}', space=sflag, size = 0x4, scoped, tag = 'scoped memory for tpu_custom_call.1']
    #allocation7 [shape = 'u8[262144]{0}', space=vmem, size = 0x40000, scoped, tag = 'input window, operand 7, single buffered']
    #allocation8 [shape = 'u8[16384]{0}', space=vmem, size = 0x4000, scoped, tag = 'output window, operand 0']
    %13 = vsyncpa [#allocation3], 0
    %14 = vsyncpa [#allocation6], 0
    %15 = vsyncpa [#allocation4], 0
    %s16 = scalar_lea.sflag [#allocation4], 1
    %17 = vsyncpa %s16, 0
    loop: start=0, step=1, limit=4
    $region2: #{tpu_custom_call.1} parent=1 // loop_pre_header
      _
    $region3: #{tpu_custom_call.1} parent=1 // loop_header
      %s19 = sphi 0, %s23
      %p20 = scmp.ge.s32.totalorder %s19, 4
      %s29 = sphi 0, %s31
      %s32 = sphi 0, %s29
      %s33 = sphi 0, %s32
      %s49 = sphi 0, %s33
      %s55 = sphi 0, %s57
      %s58 = sphi 0, %s55
      %s59 = sphi 0, %s58
      %s75 = sphi 0, %s59
      %s81 = sphi 0, %s83
      %s84 = sphi 0, %s81
      %s85 = sphi 0, %s84
      %s101 = sphi 0, %s85
      %s105 = sphi 0, %s105
      %s107 = sphi 0, %s105
      %s108 = sphi 0, %s107
      %s122 = sphi 0, %s108
      %s126 = sphi 0, %s126
      %s128 = sphi 0, %s126
      %s129 = sphi 0, %s128
      %s143 = sphi 0, %s129
      %s147 = sphi 0, %s147
      %s149 = sphi 0, %s147
      %s150 = sphi 0, %s149
      %s164 = sphi 0, %s150
      %s168 = sphi 0, %s168
      %s170 = sphi 0, %s168
      %s171 = sphi 0, %s170
      %s185 = sphi 0, %s171
      %s189 = sphi 0, %s189
      %s191 = sphi 0, %s189
      %s192 = sphi 0, %s191
      %s206 = sphi 0, %s192
      %s212 = sphi 0, %s214
      %s215 = sphi 0, %s212
      %s216 = sphi 0, %s215
      %s232 = sphi 0, %s216
    $region4: #{tpu_custom_call.1} parent=1 // loop_header_branch
      %22 = sbr.rel (%p20) target = $region8
    $region5: #{tpu_custom_call.1} parent=1 // loop_body
      %s24 = ssub.s32 %s19, 1
      %s25 = ssub.s32 %s19, 2
      %s26 = sadd.s32 %s19, 1
      %s27 = ssub.s32 %s19, %s26
      %p28 = scmp.eq.s32.totalorder %s27, 0
      %s30 = sadd.s32 %s29, 1
      %s31 = scalar_select %p28, %s29, %s30
      %p34 = pneg %p28
      %p35 = scmp.eq.s32.totalorder %s19, 1
      %p36 = por %p34, %p35
      %p37 = scmp.ne.s32.totalorder %s29, %s32
      %p38 = scmp.eq.s32.totalorder %s19, 0
      %p39 = por %p37, %p38
      %p40 = scmp.ne.s32.totalorder %s29, %s32
      %p41 = scmp.eq.s32.totalorder %s24, 1
      %p42 = por %p40, %p41
      %p43 = scmp.ne.s32.totalorder %s32, %s33
      %p44 = scmp.eq.s32.totalorder %s24, 0
      %p45 = por %p43, %p44
      %p46 = scmp.ne.s32.totalorder %s32, %s33
      %p47 = scmp.eq.s32.totalorder %s25, 1
      %p48 = por %p46, %p47
      %p50 = scmp.ne.s32.totalorder %s33, %s49
      %p51 = scmp.eq.s32.totalorder %s25, 0
      %p52 = por %p50, %p51
      %s53 = ssub.s32 %s19, %s26
      %p54 = scmp.eq.s32.totalorder %s53, 0
      %s56 = sadd.s32 %s55, 1
      %s57 = scalar_select %p54, %s55, %s56
      %p60 = pneg %p54
      %p61 = scmp.eq.s32.totalorder %s19, 1
      %p62 = por %p60, %p61
      %p63 = scmp.ne.s32.totalorder %s55, %s58
      %p64 = scmp.eq.s32.totalorder %s19, 0
      %p65 = por %p63, %p64
      %p66 = scmp.ne.s32.totalorder %s55, %s58
      %p67 = scmp.eq.s32.totalorder %s24, 1
      %p68 = por %p66, %p67
      %p69 = scmp.ne.s32.totalorder %s58, %s59
      %p70 = scmp.eq.s32.totalorder %s24, 0
      %p71 = por %p69, %p70
      %p72 = scmp.ne.s32.totalorder %s58, %s59
      %p73 = scmp.eq.s32.totalorder %s25, 1
      %p74 = por %p72, %p73
      %p76 = scmp.ne.s32.totalorder %s59, %s75
      %p77 = scmp.eq.s32.totalorder %s25, 0
      %p78 = por %p76, %p77
      %s79 = ssub.s32 %s19, %s26
      %p80 = scmp.eq.s32.totalorder %s79, 0
      %s82 = sadd.s32 %s81, 1
      %s83 = scalar_select %p80, %s81, %s82
      %p86 = pneg %p80
      %p87 = scmp.eq.s32.totalorder %s19, 1
      %p88 = por %p86, %p87
      %p89 = scmp.ne.s32.totalorder %s81, %s84
      %p90 = scmp.eq.s32.totalorder %s19, 0
      %p91 = por %p89, %p90
      %p92 = scmp.ne.s32.totalorder %s81, %s84
      %p93 = scmp.eq.s32.totalorder %s24, 1
      %p94 = por %p92, %p93
      %p95 = scmp.ne.s32.totalorder %s84, %s85
      %p96 = scmp.eq.s32.totalorder %s24, 0
      %p97 = por %p95, %p96
      %p98 = scmp.ne.s32.totalorder %s84, %s85
      %p99 = scmp.eq.s32.totalorder %s25, 1
      %p100 = por %p98, %p99
      %p102 = scmp.ne.s32.totalorder %s85, %s101
      %p103 = scmp.eq.s32.totalorder %s25, 0
      %p104 = por %p102, %p103
      %s106 = sadd.s32 %s105, 1
      %p109 = scmp.eq.s32.totalorder %s19, 1
      %p110 = scmp.ne.s32.totalorder %s105, %s107
      %p111 = scmp.eq.s32.totalorder %s19, 0
      %p112 = por %p110, %p111
      %p113 = scmp.ne.s32.totalorder %s105, %s107
      %p114 = scmp.eq.s32.totalorder %s24, 1
      %p115 = por %p113, %p114
      %p116 = scmp.ne.s32.totalorder %s107, %s108
      %p117 = scmp.eq.s32.totalorder %s24, 0
      %p118 = por %p116, %p117
      %p119 = scmp.ne.s32.totalorder %s107, %s108
      %p120 = scmp.eq.s32.totalorder %s25, 1
      %p121 = por %p119, %p120
      %p123 = scmp.ne.s32.totalorder %s108, %s122
      %p124 = scmp.eq.s32.totalorder %s25, 0
      %p125 = por %p123, %p124
      %s127 = sadd.s32 %s126, 1
      %p130 = scmp.eq.s32.totalorder %s19, 1
      %p131 = scmp.ne.s32.totalorder %s126, %s128
      %p132 = scmp.eq.s32.totalorder %s19, 0
      %p133 = por %p131, %p132
      %p134 = scmp.ne.s32.totalorder %s126, %s128
      %p135 = scmp.eq.s32.totalorder %s24, 1
      %p136 = por %p134, %p135
      %p137 = scmp.ne.s32.totalorder %s128, %s129
      %p138 = scmp.eq.s32.totalorder %s24, 0
      %p139 = por %p137, %p138
      %p140 = scmp.ne.s32.totalorder %s128, %s129
      %p141 = scmp.eq.s32.totalorder %s25, 1
      %p142 = por %p140, %p141
      %p144 = scmp.ne.s32.totalorder %s129, %s143
      %p145 = scmp.eq.s32.totalorder %s25, 0
      %p146 = por %p144, %p145
      %s148 = sadd.s32 %s147, 1
      %p151 = scmp.eq.s32.totalorder %s19, 1
      %p152 = scmp.ne.s32.totalorder %s147, %s149
      %p153 = scmp.eq.s32.totalorder %s19, 0
      %p154 = por %p152, %p153
      %p155 = scmp.ne.s32.totalorder %s147, %s149
      %p156 = scmp.eq.s32.totalorder %s24, 1
      %p157 = por %p155, %p156
      %p158 = scmp.ne.s32.totalorder %s149, %s150
      %p159 = scmp.eq.s32.totalorder %s24, 0
      %p160 = por %p158, %p159
      %p161 = scmp.ne.s32.totalorder %s149, %s150
      %p162 = scmp.eq.s32.totalorder %s25, 1
      %p163 = por %p161, %p162
      %p165 = scmp.ne.s32.totalorder %s150, %s164
      %p166 = scmp.eq.s32.totalorder %s25, 0
      %p167 = por %p165, %p166
      %s169 = sadd.s32 %s168, 1
      %p172 = scmp.eq.s32.totalorder %s19, 1
      %p173 = scmp.ne.s32.totalorder %s168, %s170
      %p174 = scmp.eq.s32.totalorder %s19, 0
      %p175 = por %p173, %p174
      %p176 = scmp.ne.s32.totalorder %s168, %s170
      %p177 = scmp.eq.s32.totalorder %s24, 1
      %p178 = por %p176, %p177
      %p179 = scmp.ne.s32.totalorder %s170, %s171
      %p180 = scmp.eq.s32.totalorder %s24, 0
      %p181 = por %p179, %p180
      %p182 = scmp.ne.s32.totalorder %s170, %s171
      %p183 = scmp.eq.s32.totalorder %s25, 1
      %p184 = por %p182, %p183
      %p186 = scmp.ne.s32.totalorder %s171, %s185
      %p187 = scmp.eq.s32.totalorder %s25, 0
      %p188 = por %p186, %p187
      %s190 = sadd.s32 %s189, 1
      %p193 = scmp.eq.s32.totalorder %s19, 1
      %p194 = scmp.ne.s32.totalorder %s189, %s191
      %p195 = scmp.eq.s32.totalorder %s19, 0
      %p196 = por %p194, %p195
      %p197 = scmp.ne.s32.totalorder %s189, %s191
      %p198 = scmp.eq.s32.totalorder %s24, 1
      %p199 = por %p197, %p198
      %p200 = scmp.ne.s32.totalorder %s191, %s192
      %p201 = scmp.eq.s32.totalorder %s24, 0
      %p202 = por %p200, %p201
      %p203 = scmp.ne.s32.totalorder %s191, %s192
      %p204 = scmp.eq.s32.totalorder %s25, 1
      %p205 = por %p203, %p204
      %p207 = scmp.ne.s32.totalorder %s192, %s206
      %p208 = scmp.eq.s32.totalorder %s25, 0
      %p209 = por %p207, %p208
      %s210 = ssub.s32 %s19, %s26
      %p211 = scmp.eq.s32.totalorder %s210, 0
      %s213 = sadd.s32 %s212, 1
      %s214 = scalar_select %p211, %s212, %s213
      %p217 = pneg %p211
      %p218 = scmp.eq.s32.totalorder %s19, 1
      %p219 = por %p217, %p218
      %p220 = scmp.ne.s32.totalorder %s212, %s215
      %p221 = scmp.eq.s32.totalorder %s19, 0
      %p222 = por %p220, %p221
      %p223 = scmp.ne.s32.totalorder %s212, %s215
      %p224 = scmp.eq.s32.totalorder %s24, 1
      %p225 = por %p223, %p224
      %p226 = scmp.ne.s32.totalorder %s215, %s216
      %p227 = scmp.eq.s32.totalorder %s24, 0
      %p228 = por %p226, %p227
      %p229 = scmp.ne.s32.totalorder %s215, %s216
      %p230 = scmp.eq.s32.totalorder %s25, 1
      %p231 = por %p229, %p230
      %p233 = scmp.ne.s32.totalorder %s216, %s232
      %p234 = scmp.eq.s32.totalorder %s25, 0
      %p235 = por %p233, %p234
      %p236 = scmp.le.s32.totalorder 1, %s19
      %p237 = scmp.lt.s32.totalorder %s19, 3
      %p238 = pnand %p236, %p237
      %p239 = pneg %p238
      // Predicated region
      $region9: #{tpu_custom_call.1} parent=5 // pred_check
        _
      $region10: #{tpu_custom_call.1} parent=5 // pred_check_branch
        %241 = sbr.rel (%p238) target = $region12
      $region11: #{tpu_custom_call.1} parent=5 // pred_region
        %s242 = ssub.s32 %s19, 1
        // Predicated region
        $region13: #{tpu_custom_call.1} parent=11 // pred_check
          %p243 = pneg %p118
        $region14: #{tpu_custom_call.1} parent=11 // pred_check_branch
          %245 = sbr.rel (%p243) target = $region16
        $region15: #{tpu_custom_call.1} parent=11 // pred_region
          _
        $region16: #{tpu_custom_call.1} parent=11 // pred_fallthru
          _
        // Predicated region
        $region17: #{tpu_custom_call.1} parent=11 // pred_check
          %p246 = pneg %p139
        $region18: #{tpu_custom_call.1} parent=11 // pred_check_branch
          %248 = sbr.rel (%p246) target = $region20
        $region19: #{tpu_custom_call.1} parent=11 // pred_region
          %s250 = ssub.s32 6272, 6272
          %251 = vsyncadd [#allocation3], %s250
          %s252 = sshll.u32 [#allocation2], 4
          %s253 = int_to_ptr.vmem [resolvable:$true] %s252
          %258 = dma.hbm_to_vmem [thread:$0]  %s4, 6272, %s253, [#allocation3], 896, 896, 56
        $region20: #{tpu_custom_call.1} parent=11 // pred_fallthru
          _
        // Predicated region
        $region21: #{tpu_custom_call.1} parent=11 // pred_check
          %p259 = pneg %p160
        $region22: #{tpu_custom_call.1} parent=11 // pred_check_branch
          %261 = sbr.rel (%p259) target = $region24
        $region23: #{tpu_custom_call.1} parent=11 // pred_region
          _
        $region24: #{tpu_custom_call.1} parent=11 // pred_fallthru
          _
        // Predicated region
        $region25: #{tpu_custom_call.1} parent=11 // pred_check
          %p262 = pneg %p181
        $region26: #{tpu_custom_call.1} parent=11 // pred_check_branch
          %264 = sbr.rel (%p262) target = $region28
        $region27: #{tpu_custom_call.1} parent=11 // pred_region
          %s266 = ssub.s32 13824, 13824
          %267 = vsyncadd [#allocation6], %s266
          %s268 = sshll.u32 [#allocation5], 4
          %s269 = int_to_ptr.vmem [resolvable:$true] %s268
          %274 = dma.hbm_to_vmem [thread:$0]  %s6, 13824, %s269, [#allocation6], 256, 256, 16
        $region28: #{tpu_custom_call.1} parent=11 // pred_fallthru
          _
        // Predicated region
        $region29: #{tpu_custom_call.1} parent=11 // pred_check
          %p275 = pneg %p202
        $region30: #{tpu_custom_call.1} parent=11 // pred_check_branch
          %277 = sbr.rel (%p275) target = $region32
        $region31: #{tpu_custom_call.1} parent=11 // pred_region
          %s279 = ssub.s32 8192, 8192
          %280 = vsyncadd [#allocation6], %s279
          %s281 = sshll.u32 [#allocation7], 4
          %s282 = int_to_ptr.vmem [resolvable:$true] %s281
          %287 = dma.hbm_to_vmem [thread:$0]  %s7, 8192, %s282, [#allocation6], 256, 256, 16
        $region32: #{tpu_custom_call.1} parent=11 // pred_fallthru
          _
      $region12: #{tpu_custom_call.1} parent=5 // pred_fallthru
        _
      %p288 = scmp.lt.s32.totalorder %s19, 2
      // Predicated region
      $region33: #{tpu_custom_call.1} parent=5 // pred_check
        %p289 = pneg %p288
      $region34: #{tpu_custom_call.1} parent=5 // pred_check_branch
        %291 = sbr.rel (%p289) target = $region36
      $region35: #{tpu_custom_call.1} parent=5 // pred_region
        // Predicated region
        $region37: #{tpu_custom_call.1} parent=35 // pred_check
          %p292 = pneg %p39
        $region38: #{tpu_custom_call.1} parent=35 // pred_check_branch
          %294 = sbr.rel (%p292) target = $region40
        $region39: #{tpu_custom_call.1} parent=35 // pred_region
          %p295 = scmp.lt.s32.totalorder %s19, 1
          %s296 = scalar_select %p295, %s19, 1
          %s297 = smul.addr %s296, 16
          %s298 = smul.addr %s297, 8
          %s299 = scalar_lea.vmem %s0, %s298
        $region40: #{tpu_custom_call.1} parent=35 // pred_fallthru
          _
        // Predicated region
        $region41: #{tpu_custom_call.1} parent=35 // pred_check
          %p300 = pneg %p65
        $region42: #{tpu_custom_call.1} parent=35 // pred_check_branch
          %302 = sbr.rel (%p300) target = $region44
        $region43: #{tpu_custom_call.1} parent=35 // pred_region
          %p303 = scmp.lt.s32.totalorder %s19, 1
          %s304 = scalar_select %p303, %s19, 1
          %s305 = smul.addr %s304, 2
          %s306 = smul.addr %s305, 8
          %s307 = scalar_lea.vmem %s1, %s306
        $region44: #{tpu_custom_call.1} parent=35 // pred_fallthru
          _
        // Predicated region
        $region45: #{tpu_custom_call.1} parent=35 // pred_check
          %p308 = pneg %p91
        $region46: #{tpu_custom_call.1} parent=35 // pred_check_branch
          %310 = sbr.rel (%p308) target = $region48
        $region47: #{tpu_custom_call.1} parent=35 // pred_region
          %p311 = scmp.lt.s32.totalorder %s19, 1
          %s312 = scalar_select %p311, %s19, 1
          %s313 = smul.addr %s312, 2
          %s314 = smul.addr %s313, 8
          %s315 = scalar_lea.vmem %s2, %s314
        $region48: #{tpu_custom_call.1} parent=35 // pred_fallthru
          _
      $region36: #{tpu_custom_call.1} parent=5 // pred_fallthru
        _
      %p316 = scmp.le.s32.totalorder 1, %s19
      %p317 = scmp.lt.s32.totalorder %s19, 3
      %p318 = pnand %p316, %p317
      %p319 = pneg %p318
      // Predicated region
      $region49: #{tpu_custom_call.1} parent=5 // pred_check
        _
      $region50: #{tpu_custom_call.1} parent=5 // pred_check_branch
        %321 = sbr.rel (%p318) target = $region52
      $region51: #{tpu_custom_call.1} parent=5 // pred_region
        %s322 = ssub.s32 %s19, 1
        // Predicated region
        $region53: #{tpu_custom_call.1} parent=51 // pred_check
          %p323 = pneg %p139
        $region54: #{tpu_custom_call.1} parent=51 // pred_check_branch
          %325 = sbr.rel (%p323) target = $region56
        $region55: #{tpu_custom_call.1} parent=51 // pred_region
          %326 = dma.done [#allocation3], 6272
        $region56: #{tpu_custom_call.1} parent=51 // pred_fallthru
          _
        // Predicated region
        $region57: #{tpu_custom_call.1} parent=51 // pred_check
          %p327 = pneg %p181
        $region58: #{tpu_custom_call.1} parent=51 // pred_check_branch
          %329 = sbr.rel (%p327) target = $region60
        $region59: #{tpu_custom_call.1} parent=51 // pred_region
          %330 = dma.done [#allocation6], 13824
        $region60: #{tpu_custom_call.1} parent=51 // pred_fallthru
          _
        // Predicated region
        $region61: #{tpu_custom_call.1} parent=51 // pred_check
          %p331 = pneg %p202
        $region62: #{tpu_custom_call.1} parent=51 // pred_check_branch
          %333 = sbr.rel (%p331) target = $region64
        $region63: #{tpu_custom_call.1} parent=51 // pred_region
          %334 = dma.done [#allocation6], 8192
        $region64: #{tpu_custom_call.1} parent=51 // pred_fallthru
          _
        %p335 = scmp.lt.s32.totalorder %s24, 1
        %s336 = scalar_select %p335, %s24, 1
        %s337 = smul.addr %s336, 16
        %s338 = smul.addr %s337, 8
        %s339 = scalar_lea.vmem %s0, %s338
        %p340 = pneg %p45
        %p341 = pneg %p42
        %p342 = scmp.lt.s32.totalorder %s24, 1
        %s343 = scalar_select %p342, %s24, 1
        %s344 = smul.addr %s343, 2
        %s345 = smul.addr %s344, 8
        %s346 = scalar_lea.vmem %s1, %s345
        %p347 = pneg %p71
        %p348 = pneg %p68
        %p349 = scmp.lt.s32.totalorder %s24, 1
        %s350 = scalar_select %p349, %s24, 1
        %s351 = smul.addr %s350, 2
        %s352 = smul.addr %s351, 8
        %s353 = scalar_lea.vmem %s2, %s352
        %p354 = pneg %p97
        %p355 = pneg %p94
        %p356 = pneg %p118
        %p357 = pneg %p115
        %p358 = pneg %p139
        %p359 = pneg %p136
        %p360 = pneg %p160
        %p361 = pneg %p157
        %p362 = pneg %p181
        %p363 = pneg %p178
        %p364 = pneg %p202
        %p365 = pneg %p199
        %p366 = pneg %p228
        %p367 = pneg %p225
        %s368 = sand.u32 %s215, 1
        %s369 = scalar_lea.sflag [#allocation4], %s368
        %s370 = sand.u32 %s215, 1
        %s371 = smul.addr %s370, 16
        %s372 = scalar_lea.vmem [#allocation8], %s371
        %p373 = scmp.lt.s32.totalorder %s24, 1
        %s374 = scalar_select %p373, %s24, 1
        %s375 = smul.addr %s374, 16
        %s376 = smul.addr %s375, 8
        %s377 = scalar_lea.vmem %s0, %s376
        %p378 = scmp.lt.s32.totalorder %s24, 1
        %s379 = scalar_select %p378, %s24, 1
        %s380 = smul.addr %s379, 2
        %s381 = smul.addr %s380, 8
        %s382 = scalar_lea.vmem %s1, %s381
        %p383 = scmp.lt.s32.totalorder %s24, 1
        %s384 = scalar_select %p383, %s24, 1
        %s385 = smul.addr %s384, 2
        %s386 = smul.addr %s385, 8
        %s387 = scalar_lea.vmem %s2, %s386
        %v388 = vld [vmem:[%s377] sm:$0xff]
        %v389 = vld [vmem:[%s377 + $0x8] sm:$0xff]
        %v390 = vld [vmem:[%s377 + $0x10] sm:$0xff]
        %v391 = vld [vmem:[%s377 + $0x18] sm:$0xff]
        %v392 = vld [vmem:[%s377 + $0x20] sm:$0xff]
        %v393 = vld [vmem:[%s377 + $0x28] sm:$0xff]
        %v394 = vld [vmem:[%s377 + $0x30] sm:$0xff]
        %v395 = vld [vmem:[%s377 + $0x38] sm:$0xff]
        %v396 = vld [vmem:[%s377 + $0x40] sm:$0xff]
        %v397 = vld [vmem:[%s377 + $0x48] sm:$0xff]
        %v398 = vld [vmem:[%s377 + $0x50] sm:$0xff]
        %v399 = vld [vmem:[%s377 + $0x58] sm:$0xff]
        %v400 = vld [vmem:[%s377 + $0x60] sm:$0xff]
        %v401 = vld [vmem:[%s377 + $0x68] sm:$0xff]
        %v402 = vld [vmem:[%s377 + $0x70] sm:$0xff]
        %v403 = vld [vmem:[%s377 + $0x78] sm:$0xff]
        %v404 = vld [vmem:[%s382] sm:$0xff]
        %v405 = vld [vmem:[%s382 + $0x8] sm:$0x1]
        %v406 = vld [vmem:[%s387] sm:$0xff]
        %v407 = vld [vmem:[%s387 + $0x8] sm:$0xff]
        %v408 = vld [vmem:[%s3] sm:$0xff]
        %v409 = vld [vmem:[%s3 + $0x8] sm:$0xff]
        %v410 = vld [vmem:[%s3 + $0x10] sm:$0xff]
        %v414 = vcombine.high %v408, %v408
        %v415 = vcombine.high %v409, %v409
        %v416 = vcombine.high %v410, %v410
        %vm417 = vcmask 31744
        %v419 = vsel %vm417, %v388, 0
        %v422 = vsel %vm417, %v389, 0
        %v425 = vsel %vm417, %v390, 0
        %v428 = vsel %vm417, %v391, 0
        %v431 = vsel %vm417, %v392, 0
        %v434 = vsel %vm417, %v393, 0
        %v437 = vsel %vm417, %v394, 0
        %v440 = vsel %vm417, %v395, 0
        %v443 = vsel %vm417, %v396, 0
        %v446 = vsel %vm417, %v397, 0
        %v449 = vsel %vm417, %v398, 0
        %v452 = vsel %vm417, %v399, 0
        %v455 = vsel %vm417, %v400, 0
        %v458 = vsel %vm417, %v401, 0
        %v461 = vsel %vm417, %v402, 0
        %v464 = vsel %vm417, %v403, 0
        %vm466 = vcmask 1043456
        %v467 = vsel %vm466, %v408, 0
        %v469 = vsel %vm466, %v414, 0
        %v471 = vsel %vm466, %v409, 0
        %v473 = vsel %vm466, %v415, 0
        %v475 = vsel %vm466, %v410, 0
        %v477 = vsel %vm466, %v416, 0
        %479 = vmatprep.subr.mxu0 %v469
        %480 = vmatpush1.msra.mxu0 %v467
        %481 = vmatprep.subr.mxu0 0.0
        %482 = vmatpush1.msra.mxu0 0.0
        %483 = vmatprep.subr.mxu0 0.0
        %484 = vmatpush1.msra.mxu0 0.0
        %485 = vmatprep.subr.mxu0 0.0
        %486 = vmatpush1.msra.mxu0 0.0
        %487 = vmatprep.subr.mxu0 0.0
        %488 = vmatpush1.msra.mxu0 0.0
        %489 = vmatprep.subr.mxu0 0.0
        %490 = vmatpush1.msra.mxu0 0.0
        %491 = vmatprep.subr.mxu0 0.0
        %492 = vmatpush1.msra.mxu0 0.0
        %493 = vmatprep.subr.mxu0 0.0
        %494 = vmatpush1.msra.mxu0 0.0
        %495 = vmatprep.subr.mxu0 0.0
        %496 = vmatpush1.msra.mxu0 0.0
        %497 = vmatprep.subr.mxu0 0.0
        %498 = vmatpush1.msra.mxu0 0.0
        %499 = vmatprep.subr.mxu0 0.0
        %500 = vmatpush1.msra.mxu0 0.0
        %501 = vmatprep.subr.mxu0 0.0
        %502 = vmatpush1.msra.mxu0 0.0
        %503 = vmatprep.subr.mxu0 0.0
        %504 = vmatpush1.msra.mxu0 0.0
        %505 = vmatprep.subr.mxu0 0.0
        %506 = vmatpush1.msra.mxu0 0.0
        %507 = vmatprep.subr.mxu0 0.0
        %508 = vmatpush1.msra.mxu0 0.0
        %509 = vmatprep.subr.mxu0 0.0
        %510 = vmatpush1.msra.mxu0 0.0
        %511 = vmatprep.subr.mxu0 0.0
        %512 = vmatpush1.msra.mxu0 0.0
        %513 = vmatprep.subr.mxu0 0.0
        %514 = vmatpush1.msra.mxu0 0.0
        %515 = vmatprep.subr.mxu0 0.0
        %516 = vmatpush1.msra.mxu0 0.0
        %517 = vmatprep.subr.mxu0 0.0
        %518 = vmatpush1.msra.mxu0 0.0
        %519 = vmatprep.subr.mxu0 0.0
        %520 = vmatpush1.msra.mxu0 0.0
        %521 = vmatprep.subr.mxu0 0.0
        %522 = vmatpush1.msra.mxu0 0.0
        %523 = vmatprep.subr.mxu0 0.0
        %524 = vmatpush1.msra.mxu0 0.0
        %525 = vmatprep.subr.mxu0 0.0
        %526 = vmatpush1.msra.mxu0 0.0
        %527 = vmatprep.subr.mxu0 0.0
        %528 = vmatpush1.msra.mxu0 0.0
        %529 = vmatprep.subr.mxu0 0.0
        %530 = vmatpush1.msra.mxu0 0.0
        %531 = vmatprep.subr.mxu0 0.0
        %532 = vmatpush1.msra.mxu0 0.0
        %533 = vmatprep.subr.mxu0 0.0
        %534 = vmatpush1.msra.mxu0 0.0
        %535 = vmatprep.subr.mxu0 0.0
        %536 = vmatpush1.msra.mxu0 0.0
        %537 = vmatprep.subr.mxu0 0.0
        %538 = vmatpush1.msra.mxu0 0.0
        %539 = vmatprep.subr.mxu0 0.0
        %540 = vmatpush1.msra.mxu0 0.0
        %541 = vmatprep.subr.mxu0 0.0
        %542 = vmatpush1.msra.mxu0 0.0
        %543 = vmatprep.mubr.f32.mxu0 0.0
        %544 = vmatmul.mubr.f32.gmra.mrb[0].mxu0 %v419
        %v545 = vpop.f32.mrb[0].mxu0
        %v546 = vadd.f32 0.0, %v545
        %v547 = vpop.f32.mrb[0].mxu0
        %v548 = vadd.f32 0.0, %v547
        %549 = vmatprep.mubr.f32.mxu0 0.0
        %550 = vmatmul.mubr.f32.gmra.mrb[0].mxu0 %v422
        %v551 = vpop.f32.mrb[0].mxu0
        %v552 = vadd.f32 0.0, %v551
        %v553 = vpop.f32.mrb[0].mxu0
        %v554 = vadd.f32 0.0, %v553
        %555 = vmatprep.mubr.f32.mxu0 0.0
        %556 = vmatmul.mubr.f32.gmra.mrb[0].mxu0 %v425
        %v557 = vpop.f32.mrb[0].mxu0
        %v558 = vadd.f32 0.0, %v557
        %v559 = vpop.f32.mrb[0].mxu0
        %v560 = vadd.f32 0.0, %v559
        %561 = vmatprep.mubr.f32.mxu0 0.0
        %562 = vmatmul.mubr.f32.gmra.mrb[0].mxu0 %v428
        %v563 = vpop.f32.mrb[0].mxu0
        %v564 = vadd.f32 0.0, %v563
        %v565 = vpop.f32.mrb[0].mxu0
        %v566 = vadd.f32 0.0, %v565
        %567 = vmatprep.mubr.f32.mxu0 0.0
        %568 = vmatmul.mubr.f32.gmra.mrb[0].mxu0 %v431
        %v569 = vpop.f32.mrb[0].mxu0
        %v570 = vadd.f32 0.0, %v569
        %v571 = vpop.f32.mrb[0].mxu0
        %v572 = vadd.f32 0.0, %v571
        %573 = vmatprep.mubr.f32.mxu0 0.0
        %574 = vmatmul.mubr.f32.gmra.mrb[0].mxu0 %v434
        %v575 = vpop.f32.mrb[0].mxu0
        %v576 = vadd.f32 0.0, %v575
        %v577 = vpop.f32.mrb[0].mxu0
        %v578 = vadd.f32 0.0, %v577
        %579 = vmatprep.mubr.f32.mxu0 0.0
        %580 = vmatmul.mubr.f32.gmra.mrb[0].mxu0 %v437
        %v581 = vpop.f32.mrb[0].mxu0
        %v582 = vadd.f32 0.0, %v581
        %v583 = vpop.f32.mrb[0].mxu0
        %v584 = vadd.f32 0.0, %v583
        %585 = vmatprep.mubr.f32.mxu0 0.0
        %586 = vmatmul.mubr.f32.gmra.mrb[0].mxu0 %v440
        %v587 = vpop.f32.mrb[0].mxu0
        %v588 = vadd.f32 0.0, %v587
        %v589 = vpop.f32.mrb[0].mxu0
        %v590 = vadd.f32 0.0, %v589
        %591 = vmatprep.mubr.f32.mxu0 0.0
        %592 = vmatmul.mubr.f32.gmra.mrb[0].mxu0 %v443
        %v593 = vpop.f32.mrb[0].mxu0
        %v594 = vadd.f32 0.0, %v593
        %v595 = vpop.f32.mrb[0].mxu0
        %v596 = vadd.f32 0.0, %v595
        %597 = vmatprep.mubr.f32.mxu0 0.0
        %598 = vmatmul.mubr.f32.gmra.mrb[0].mxu0 %v446
        %v599 = vpop.f32.mrb[0].mxu0
        %v600 = vadd.f32 0.0, %v599
        %v601 = vpop.f32.mrb[0].mxu0
        %v602 = vadd.f32 0.0, %v601
        %603 = vmatprep.mubr.f32.mxu0 0.0
        %604 = vmatmul.mubr.f32.gmra.mrb[0].mxu0 %v449
        %v605 = vpop.f32.mrb[0].mxu0
        %v606 = vadd.f32 0.0, %v605
        %v607 = vpop.f32.mrb[0].mxu0
        %v608 = vadd.f32 0.0, %v607
        %609 = vmatprep.mubr.f32.mxu0 0.0
        %610 = vmatmul.mubr.f32.gmra.mrb[0].mxu0 %v452
        %v611 = vpop.f32.mrb[0].mxu0
        %v612 = vadd.f32 0.0, %v611
        %v613 = vpop.f32.mrb[0].mxu0
        %v614 = vadd.f32 0.0, %v613
        %615 = vmatprep.mubr.f32.mxu0 0.0
        %616 = vmatmul.mubr.f32.gmra.mrb[0].mxu0 %v455
        %v617 = vpop.f32.mrb[0].mxu0
        %v618 = vadd.f32 0.0, %v617
        %v619 = vpop.f32.mrb[0].mxu0
        %v620 = vadd.f32 0.0, %v619
        %621 = vmatprep.mubr.f32.mxu0 0.0
        %622 = vmatmul.mubr.f32.gmra.mrb[0].mxu0 %v458
        %v623 = vpop.f32.mrb[0].mxu0
        %v624 = vadd.f32 0.0, %v623
        %v625 = vpop.f32.mrb[0].mxu0
        %v626 = vadd.f32 0.0, %v625
        %627 = vmatprep.mubr.f32.mxu0 0.0
        %628 = vmatmul.mubr.f32.gmra.mrb[0].mxu0 %v461
        %v629 = vpop.f32.mrb[0].mxu0
        %v630 = vadd.f32 0.0, %v629
        %v631 = vpop.f32.mrb[0].mxu0
        %v632 = vadd.f32 0.0, %v631
        %633 = vmatprep.mubr.f32.mxu0 0.0
        %634 = vmatmul.mubr.f32.gmra.mrb[0].mxu0 %v464
        %v635 = vpop.f32.mrb[0].mxu0
        %v636 = vadd.f32 0.0, %v635
        %v637 = vpop.f32.mrb[0].mxu0
        %v638 = vadd.f32 0.0, %v637
        %639 = vdwg.mxu0
        %640 = vmatprep.subr.mxu0 %v473
        %641 = vmatpush1.msra.mxu0 %v471
        %642 = vmatprep.subr.mxu0 0.0
        %643 = vmatpush1.msra.mxu0 0.0
        %644 = vmatprep.subr.mxu0 0.0
        %645 = vmatpush1.msra.mxu0 0.0
        %646 = vmatprep.subr.mxu0 0.0
        %647 = vmatpush1.msra.mxu0 0.0
        %648 = vmatprep.subr.mxu0 0.0
        %649 = vmatpush1.msra.mxu0 0.0
        %650 = vmatprep.subr.mxu0 0.0
        %651 = vmatpush1.msra.mxu0 0.0
        %652 = vmatprep.subr.mxu0 0.0
        %653 = vmatpush1.msra.mxu0 0.0
        %654 = vmatprep.subr.mxu0 0.0
        %655 = vmatpush1.msra.mxu0 0.0
        %656 = vmatprep.subr.mxu0 0.0
        %657 = vmatpush1.msra.mxu0 0.0
        %658 = vmatprep.subr.mxu0 0.0
        %659 = vmatpush1.msra.mxu0 0.0
        %660 = vmatprep.subr.mxu0 0.0
        %661 = vmatpush1.msra.mxu0 0.0
        %662 = vmatprep.subr.mxu0 0.0
        %663 = vmatpush1.msra.mxu0 0.0
        %664 = vmatprep.subr.mxu0 0.0
        %665 = vmatpush1.msra.mxu0 0.0
        %666 = vmatprep.subr.mxu0 0.0
        %667 = vmatpush1.msra.mxu0 0.0
        %668 = vmatprep.subr.mxu0 0.0
        %669 = vmatpush1.msra.mxu0 0.0
        %670 = vmatprep.subr.mxu0 0.0
        %671 = vmatpush1.msra.mxu0 0.0
        %672 = vmatprep.subr.mxu0 0.0
        %673 = vmatpush1.msra.mxu0 0.0
        %674 = vmatprep.subr.mxu0 0.0
        %675 = vmatpush1.msra.mxu0 0.0
        %676 = vmatprep.subr.mxu0 0.0
        %677 = vmatpush1.msra.mxu0 0.0
        %678 = vmatprep.subr.mxu0 0.0
        %679 = vmatpush1.msra.mxu0 0.0
        %680 = vmatprep.subr.mxu0 0.0
        %681 = vmatpush1.msra.mxu0 0.0
        %682 = vmatprep.subr.mxu0 0.0
        %683 = vmatpush1.msra.mxu0 0.0
        %684 = vmatprep.subr.mxu0 0.0
        %685 = vmatpush1.msra.mxu0 0.0
        %686 = vmatprep.subr.mxu0 0.0
        %687 = vmatpush1.msra.mxu0 0.0
        %688 = vmatprep.subr.mxu0 0.0
        %689 = vmatpush1.msra.mxu0 0.0
        %690 = vmatprep.subr.mxu0 0.0
        %691 = vmatpush1.msra.mxu0 0.0
        %692 = vmatprep.subr.mxu0 0.0
        %693 = vmatpush1.msra.mxu0 0.0
        %694 = vmatprep.subr.mxu0 0.0
        %695 = vmatpush1.msra.mxu0 0.0
        %696 = vmatprep.subr.mxu0 0.0
        %697 = vmatpush1.msra.mxu0 0.0
        %698 = vmatprep.subr.mxu0 0.0
        %699 = vmatpush1.msra.mxu0 0.0
        %700 = vmatprep.subr.mxu0 0.0
        %701 = vmatpush1.msra.mxu0 0.0
        %702 = vmatprep.subr.mxu0 0.0
        %703 = vmatpush1.msra.mxu0 0.0
        %704 = vmatprep.mubr.f32.mxu0 0.0
        %705 = vmatmul.mubr.f32.gmra.mrb[0].mxu0 %v419
        %v706 = vpop.f32.mrb[0].mxu0
        %v707 = vadd.f32 0.0, %v706
        %v708 = vpop.f32.mrb[0].mxu0
        %v709 = vadd.f32 0.0, %v708
        %710 = vmatprep.mubr.f32.mxu0 0.0
        %711 = vmatmul.mubr.f32.gmra.mrb[0].mxu0 %v422
        %v712 = vpop.f32.mrb[0].mxu0
        %v713 = vadd.f32 0.0, %v712
        %v714 = vpop.f32.mrb[0].mxu0
        %v715 = vadd.f32 0.0, %v714
        %716 = vmatprep.mubr.f32.mxu0 0.0
        %717 = vmatmul.mubr.f32.gmra.mrb[0].mxu0 %v425
        %v718 = vpop.f32.mrb[0].mxu0
        %v719 = vadd.f32 0.0, %v718
        %v720 = vpop.f32.mrb[0].mxu0
        %v721 = vadd.f32 0.0, %v720
        %722 = vmatprep.mubr.f32.mxu0 0.0
        %723 = vmatmul.mubr.f32.gmra.mrb[0].mxu0 %v428
        %v724 = vpop.f32.mrb[0].mxu0
        %v725 = vadd.f32 0.0, %v724
        %v726 = vpop.f32.mrb[0].mxu0
        %v727 = vadd.f32 0.0, %v726
        %728 = vmatprep.mubr.f32.mxu0 0.0
        %729 = vmatmul.mubr.f32.gmra.mrb[0].mxu0 %v431
        %v730 = vpop.f32.mrb[0].mxu0
        %v731 = vadd.f32 0.0, %v730
        %v732 = vpop.f32.mrb[0].mxu0
        %v733 = vadd.f32 0.0, %v732
        %734 = vmatprep.mubr.f32.mxu0 0.0
        %735 = vmatmul.mubr.f32.gmra.mrb[0].mxu0 %v434
        %v736 = vpop.f32.mrb[0].mxu0
        %v737 = vadd.f32 0.0, %v736
        %v738 = vpop.f32.mrb[0].mxu0
        %v739 = vadd.f32 0.0, %v738
        %740 = vmatprep.mubr.f32.mxu0 0.0
        %741 = vmatmul.mubr.f32.gmra.mrb[0].mxu0 %v437
        %v742 = vpop.f32.mrb[0].mxu0
        %v743 = vadd.f32 0.0, %v742
        %v744 = vpop.f32.mrb[0].mxu0
        %v745 = vadd.f32 0.0, %v744
        %746 = vmatprep.mubr.f32.mxu0 0.0
        %747 = vmatmul.mubr.f32.gmra.mrb[0].mxu0 %v440
        %v748 = vpop.f32.mrb[0].mxu0
        %v749 = vadd.f32 0.0, %v748
        %v750 = vpop.f32.mrb[0].mxu0
        %v751 = vadd.f32 0.0, %v750
        %752 = vmatprep.mubr.f32.mxu0 0.0
        %753 = vmatmul.mubr.f32.gmra.mrb[0].mxu0 %v443
        %v754 = vpop.f32.mrb[0].mxu0
        %v755 = vadd.f32 0.0, %v754
        %v756 = vpop.f32.mrb[0].mxu0
        %v757 = vadd.f32 0.0, %v756
        %758 = vmatprep.mubr.f32.mxu0 0.0
        %759 = vmatmul.mubr.f32.gmra.mrb[0].mxu0 %v446
        %v760 = vpop.f32.mrb[0].mxu0
        %v761 = vadd.f32 0.0, %v760
        %v762 = vpop.f32.mrb[0].mxu0
        %v763 = vadd.f32 0.0, %v762
        %764 = vmatprep.mubr.f32.mxu0 0.0
        %765 = vmatmul.mubr.f32.gmra.mrb[0].mxu0 %v449
        %v766 = vpop.f32.mrb[0].mxu0
        %v767 = vadd.f32 0.0, %v766
        %v768 = vpop.f32.mrb[0].mxu0
        %v769 = vadd.f32 0.0, %v768
        %770 = vmatprep.mubr.f32.mxu0 0.0
        %771 = vmatmul.mubr.f32.gmra.mrb[0].mxu0 %v452
        %v772 = vpop.f32.mrb[0].mxu0
        %v773 = vadd.f32 0.0, %v772
        %v774 = vpop.f32.mrb[0].mxu0
        %v775 = vadd.f32 0.0, %v774
        %776 = vmatprep.mubr.f32.mxu0 0.0
        %777 = vmatmul.mubr.f32.gmra.mrb[0].mxu0 %v455
        %v778 = vpop.f32.mrb[0].mxu0
        %v779 = vadd.f32 0.0, %v778
        %v780 = vpop.f32.mrb[0].mxu0
        %v781 = vadd.f32 0.0, %v780
        %782 = vmatprep.mubr.f32.mxu0 0.0
        %783 = vmatmul.mubr.f32.gmra.mrb[0].mxu0 %v458
        %v784 = vpop.f32.mrb[0].mxu0
        %v785 = vadd.f32 0.0, %v784
        %v786 = vpop.f32.mrb[0].mxu0
        %v787 = vadd.f32 0.0, %v786
        %788 = vmatprep.mubr.f32.mxu0 0.0
        %789 = vmatmul.mubr.f32.gmra.mrb[0].mxu0 %v461
        %v790 = vpop.f32.mrb[0].mxu0
        %v791 = vadd.f32 0.0, %v790
        %v792 = vpop.f32.mrb[0].mxu0
        %v793 = vadd.f32 0.0, %v792
        %794 = vmatprep.mubr.f32.mxu0 0.0
        %795 = vmatmul.mubr.f32.gmra.mrb[0].mxu0 %v464
        %v796 = vpop.f32.mrb[0].mxu0
        %v797 = vadd.f32 0.0, %v796
        %v798 = vpop.f32.mrb[0].mxu0
        %v799 = vadd.f32 0.0, %v798
        %800 = vdwg.mxu0
        %801 = vmatprep.subr.mxu0 %v477
        %802 = vmatpush1.msra.mxu0 %v475
        %803 = vmatprep.subr.mxu0 0.0
        %804 = vmatpush1.msra.mxu0 0.0
        %805 = vmatprep.subr.mxu0 0.0
        %806 = vmatpush1.msra.mxu0 0.0
        %807 = vmatprep.subr.mxu0 0.0
        %808 = vmatpush1.msra.mxu0 0.0
        %809 = vmatprep.subr.mxu0 0.0
        %810 = vmatpush1.msra.mxu0 0.0
        %811 = vmatprep.subr.mxu0 0.0
        %812 = vmatpush1.msra.mxu0 0.0
        %813 = vmatprep.subr.mxu0 0.0
        %814 = vmatpush1.msra.mxu0 0.0
        %815 = vmatprep.subr.mxu0 0.0
        %816 = vmatpush1.msra.mxu0 0.0
        %817 = vmatprep.subr.mxu0 0.0
        %818 = vmatpush1.msra.mxu0 0.0
        %819 = vmatprep.subr.mxu0 0.0
        %820 = vmatpush1.msra.mxu0 0.0
        %821 = vmatprep.subr.mxu0 0.0
        %822 = vmatpush1.msra.mxu0 0.0
        %823 = vmatprep.subr.mxu0 0.0
        %824 = vmatpush1.msra.mxu0 0.0
        %825 = vmatprep.subr.mxu0 0.0
        %826 = vmatpush1.msra.mxu0 0.0
        %827 = vmatprep.subr.mxu0 0.0
        %828 = vmatpush1.msra.mxu0 0.0
        %829 = vmatprep.subr.mxu0 0.0
        %830 = vmatpush1.msra.mxu0 0.0
        %831 = vmatprep.subr.mxu0 0.0
        %832 = vmatpush1.msra.mxu0 0.0
        %833 = vmatprep.subr.mxu0 0.0
        %834 = vmatpush1.msra.mxu0 0.0
        %835 = vmatprep.subr.mxu0 0.0
        %836 = vmatpush1.msra.mxu0 0.0
        %837 = vmatprep.subr.mxu0 0.0
        %838 = vmatpush1.msra.mxu0 0.0
        %839 = vmatprep.subr.mxu0 0.0
        %840 = vmatpush1.msra.mxu0 0.0
        %841 = vmatprep.subr.mxu0 0.0
        %842 = vmatpush1.msra.mxu0 0.0
        %843 = vmatprep.subr.mxu0 0.0
        %844 = vmatpush1.msra.mxu0 0.0
        %845 = vmatprep.subr.mxu0 0.0
        %846 = vmatpush1.msra.mxu0 0.0
        %847 = vmatprep.subr.mxu0 0.0
        %848 = vmatpush1.msra.mxu0 0.0
        %849 = vmatprep.subr.mxu0 0.0
        %850 = vmatpush1.msra.mxu0 0.0
        %851 = vmatprep.subr.mxu0 0.0
        %852 = vmatpush1.msra.mxu0 0.0
        %853 = vmatprep.subr.mxu0 0.0
        %854 = vmatpush1.msra.mxu0 0.0
        %855 = vmatprep.subr.mxu0 0.0
        %856 = vmatpush1.msra.mxu0 0.0
        %857 = vmatprep.subr.mxu0 0.0
        %858 = vmatpush1.msra.mxu0 0.0
        %859 = vmatprep.subr.mxu0 0.0
        %860 = vmatpush1.msra.mxu0 0.0
        %861 = vmatprep.subr.mxu0 0.0
        %862 = vmatpush1.msra.mxu0 0.0
        %863 = vmatprep.subr.mxu0 0.0
        %864 = vmatpush1.msra.mxu0 0.0
        %865 = vmatprep.mubr.f32.mxu0 0.0
        %866 = vmatmul.mubr.f32.gmra.mrb[0].mxu0 %v419
        %v867 = vpop.f32.mrb[0].mxu0
        %v868 = vadd.f32 0.0, %v867
        %v869 = vpop.f32.mrb[0].mxu0
        %v870 = vadd.f32 0.0, %v869
        %871 = vmatprep.mubr.f32.mxu0 0.0
        %872 = vmatmul.mubr.f32.gmra.mrb[0].mxu0 %v422
        %v873 = vpop.f32.mrb[0].mxu0
        %v874 = vadd.f32 0.0, %v873
        %v875 = vpop.f32.mrb[0].mxu0
        %v876 = vadd.f32 0.0, %v875
        %877 = vmatprep.mubr.f32.mxu0 0.0
        %878 = vmatmul.mubr.f32.gmra.mrb[0].mxu0 %v425
        %v879 = vpop.f32.mrb[0].mxu0
        %v880 = vadd.f32 0.0, %v879
        %v881 = vpop.f32.mrb[0].mxu0
        %v882 = vadd.f32 0.0, %v881
        %883 = vmatprep.mubr.f32.mxu0 0.0
        %884 = vmatmul.mubr.f32.gmra.mrb[0].mxu0 %v428
        %v885 = vpop.f32.mrb[0].mxu0
        %v886 = vadd.f32 0.0, %v885
        %v887 = vpop.f32.mrb[0].mxu0
        %v888 = vadd.f32 0.0, %v887
        %889 = vmatprep.mubr.f32.mxu0 0.0
        %890 = vmatmul.mubr.f32.gmra.mrb[0].mxu0 %v431
        %v891 = vpop.f32.mrb[0].mxu0
        %v892 = vadd.f32 0.0, %v891
        %v893 = vpop.f32.mrb[0].mxu0
        %v894 = vadd.f32 0.0, %v893
        %895 = vmatprep.mubr.f32.mxu0 0.0
        %896 = vmatmul.mubr.f32.gmra.mrb[0].mxu0 %v434
        %v897 = vpop.f32.mrb[0].mxu0
        %v898 = vadd.f32 0.0, %v897
        %v899 = vpop.f32.mrb[0].mxu0
        %v900 = vadd.f32 0.0, %v899
        %901 = vmatprep.mubr.f32.mxu0 0.0
        %902 = vmatmul.mubr.f32.gmra.mrb[0].mxu0 %v437
        %v903 = vpop.f32.mrb[0].mxu0
        %v904 = vadd.f32 0.0, %v903
        %v905 = vpop.f32.mrb[0].mxu0
        %v906 = vadd.f32 0.0, %v905
        %907 = vmatprep.mubr.f32.mxu0 0.0
        %908 = vmatmul.mubr.f32.gmra.mrb[0].mxu0 %v440
        %v909 = vpop.f32.mrb[0].mxu0
        %v910 = vadd.f32 0.0, %v909
        %v911 = vpop.f32.mrb[0].mxu0
        %v912 = vadd.f32 0.0, %v911
        %913 = vmatprep.mubr.f32.mxu0 0.0
        %914 = vmatmul.mubr.f32.gmra.mrb[0].mxu0 %v443
        %v915 = vpop.f32.mrb[0].mxu0
        %v916 = vadd.f32 0.0, %v915
        %v917 = vpop.f32.mrb[0].mxu0
        %v918 = vadd.f32 0.0, %v917
        %919 = vmatprep.mubr.f32.mxu0 0.0
        %920 = vmatmul.mubr.f32.gmra.mrb[0].mxu0 %v446
        %v921 = vpop.f32.mrb[0].mxu0
        %v922 = vadd.f32 0.0, %v921
        %v923 = vpop.f32.mrb[0].mxu0
        %v924 = vadd.f32 0.0, %v923
        %925 = vmatprep.mubr.f32.mxu0 0.0
        %926 = vmatmul.mubr.f32.gmra.mrb[0].mxu0 %v449
        %v927 = vpop.f32.mrb[0].mxu0
        %v928 = vadd.f32 0.0, %v927
        %v929 = vpop.f32.mrb[0].mxu0
        %v930 = vadd.f32 0.0, %v929
        %931 = vmatprep.mubr.f32.mxu0 0.0
        %932 = vmatmul.mubr.f32.gmra.mrb[0].mxu0 %v452
        %v933 = vpop.f32.mrb[0].mxu0
        %v934 = vadd.f32 0.0, %v933
        %v935 = vpop.f32.mrb[0].mxu0
        %v936 = vadd.f32 0.0, %v935
        %937 = vmatprep.mubr.f32.mxu0 0.0
        %938 = vmatmul.mubr.f32.gmra.mrb[0].mxu0 %v455
        %v939 = vpop.f32.mrb[0].mxu0
        %v940 = vadd.f32 0.0, %v939
        %v941 = vpop.f32.mrb[0].mxu0
        %v942 = vadd.f32 0.0, %v941
        %943 = vmatprep.mubr.f32.mxu0 0.0
        %944 = vmatmul.mubr.f32.gmra.mrb[0].mxu0 %v458
        %v945 = vpop.f32.mrb[0].mxu0
        %v946 = vadd.f32 0.0, %v945
        %v947 = vpop.f32.mrb[0].mxu0
        %v948 = vadd.f32 0.0, %v947
        %949 = vmatprep.mubr.f32.mxu0 0.0
        %950 = vmatmul.mubr.f32.gmra.mrb[0].mxu0 %v461
        %v951 = vpop.f32.mrb[0].mxu0
        %v952 = vadd.f32 0.0, %v951
        %v953 = vpop.f32.mrb[0].mxu0
        %v954 = vadd.f32 0.0, %v953
        %955 = vmatprep.mubr.f32.mxu0 0.0
        %956 = vmatmul.mubr.f32.gmra.mrb[0].mxu0 %v464
        %v957 = vpop.f32.mrb[0].mxu0
        %v958 = vadd.f32 0.0, %v957
        %v959 = vpop.f32.mrb[0].mxu0
        %v960 = vadd.f32 0.0, %v959
        %961 = vdwg.mxu0
        %v962 = vld [vmem:[#allocation2] sm:$0xff]
        %v963 = vld [vmem:[#allocation2 + $0x8] sm:$0xff]
        %v964 = vld [vmem:[#allocation2 + $0x10] sm:$0xff]
        %v965 = vld [vmem:[#allocation2 + $0x18] sm:$0xff]
        %v966 = vld [vmem:[#allocation2 + $0x20] sm:$0xff]
        %v967 = vld [vmem:[#allocation2 + $0x28] sm:$0xff]
        %v968 = vld [vmem:[#allocation2 + $0x30] sm:$0xff]
        %v969 = vld [vmem:[#allocation2 + $0x38] sm:$0xff]
        %v970 = vld [vmem:[#allocation2 + $0x40] sm:$0xff]
        %v971 = vld [vmem:[#allocation2 + $0x48] sm:$0xff]
        %v972 = vld [vmem:[#allocation2 + $0x50] sm:$0xff]
        %v973 = vld [vmem:[#allocation2 + $0x58] sm:$0xff]
        %v974 = vld [vmem:[#allocation2 + $0x60] sm:$0xff]
        %v975 = vld [vmem:[#allocation2 + $0x68] sm:$0xff]
        %v976 = vld [vmem:[#allocation2 + $0x70] sm:$0xff]
        %v977 = vld [vmem:[#allocation2 + $0x78] sm:$0xff]
        %v978 = vld [vmem:[#allocation2 + $0x80] sm:$0xff]
        %v979 = vld [vmem:[#allocation2 + $0x88] sm:$0xff]
        %v980 = vld [vmem:[#allocation2 + $0x90] sm:$0xff]
        %v981 = vld [vmem:[#allocation2 + $0x98] sm:$0xff]
        %v982 = vld [vmem:[#allocation2 + $0xa0] sm:$0xff]
        %v983 = vld [vmem:[#allocation2 + $0xa8] sm:$0xff]
        %v984 = vld [vmem:[#allocation2 + $0xb0] sm:$0xff]
        %v985 = vld [vmem:[#allocation2 + $0xb8] sm:$0xff]
        %v986 = vld [vmem:[#allocation2 + $0xc0] sm:$0xff]
        %v987 = vld [vmem:[#allocation2 + $0xc8] sm:$0xff]
        %v988 = vld [vmem:[#allocation2 + $0xd0] sm:$0xff]
        %v989 = vld [vmem:[#allocation2 + $0xd8] sm:$0xff]
        %v990 = vld [vmem:[#allocation2 + $0xe0] sm:$0xff]
        %v991 = vld [vmem:[#allocation2 + $0xe8] sm:$0xff]
        %v992 = vld [vmem:[#allocation2 + $0xf0] sm:$0xff]
        %v993 = vld [vmem:[#allocation2 + $0xf8] sm:$0xff]
        %v994 = vld [vmem:[#allocation2 + $0x100] sm:$0xff]
        %v995 = vld [vmem:[#allocation2 + $0x108] sm:$0xff]
        %v996 = vld [vmem:[#allocation2 + $0x110] sm:$0xff]
        %v997 = vld [vmem:[#allocation2 + $0x118] sm:$0xff]
        %v998 = vld [vmem:[#allocation2 + $0x120] sm:$0xff]
        %v999 = vld [vmem:[#allocation2 + $0x128] sm:$0xff]
        %v1000 = vld [vmem:[#allocation2 + $0x130] sm:$0xff]
        %v1001 = vld [vmem:[#allocation2 + $0x138] sm:$0xff]
        %v1002 = vld [vmem:[#allocation2 + $0x140] sm:$0xff]
        %v1003 = vld [vmem:[#allocation2 + $0x148] sm:$0xff]
        %v1004 = vld [vmem:[#allocation2 + $0x150] sm:$0x1]
        %v1005 = vld [vmem:[#allocation2 + $0x158] sm:$0x1]
        %v1006 = vld [vmem:[#allocation2 + $0x160] sm:$0x1]
        %v1007 = vld [vmem:[#allocation2 + $0x168] sm:$0x1]
        %v1008 = vld [vmem:[#allocation2 + $0x170] sm:$0x1]
        %v1009 = vld [vmem:[#allocation2 + $0x178] sm:$0x1]
        %v1010 = vld [vmem:[#allocation2 + $0x180] sm:$0x1]
        %vm1011 = vcmask 400384
        %v1013 = vsel %vm1011, %v404, 0
        %v1016 = vsel %vm1011, %v405, 0
        %vm1018 = vcmask 1040384
        %v1020 = vsel %vm1018, %v1004, 0
        %v1023 = vsel %vm1018, %v1005, 0
        %v1026 = vsel %vm1018, %v1006, 0
        %v1029 = vsel %vm1018, %v1007, 0
        %v1032 = vsel %vm1018, %v1008, 0
        %v1035 = vsel %vm1018, %v1009, 0
        %v1038 = vsel %vm1018, %v1010, 0
        %1040 = vmatprep.subr.mxu0 %v963
        %1041 = vmatpush1.msra.mxu0 %v962
        %1042 = vmatprep.subr.mxu0 %v970
        %1043 = vmatpush1.msra.mxu0 %v969
        %1044 = vmatprep.subr.mxu0 %v977
        %1045 = vmatpush1.msra.mxu0 %v976
        %1046 = vmatprep.subr.mxu0 %v984
        %1047 = vmatpush1.msra.mxu0 %v983
        %1048 = vmatprep.subr.mxu0 %v991
        %1049 = vmatpush1.msra.mxu0 %v990
        %1050 = vmatprep.subr.mxu0 %v998
        %1051 = vmatpush1.msra.mxu0 %v997
        %1052 = vmatprep.subr.mxu0 %v1023
        %1053 = vmatpush1.msra.mxu0 %v1020
        %1054 = vmatprep.subr.mxu0 0.0
        %1055 = vmatpush1.msra.mxu0 0.0
        %1056 = vmatprep.subr.mxu0 0.0
        %1057 = vmatpush1.msra.mxu0 0.0
        %1058 = vmatprep.subr.mxu0 0.0
        %1059 = vmatpush1.msra.mxu0 0.0
        %1060 = vmatprep.subr.mxu0 0.0
        %1061 = vmatpush1.msra.mxu0 0.0
        %1062 = vmatprep.subr.mxu0 0.0
        %1063 = vmatpush1.msra.mxu0 0.0
        %1064 = vmatprep.subr.mxu0 0.0
        %1065 = vmatpush1.msra.mxu0 0.0
        %1066 = vmatprep.subr.mxu0 0.0
        %1067 = vmatpush1.msra.mxu0 0.0
        %1068 = vmatprep.subr.mxu0 0.0
        %1069 = vmatpush1.msra.mxu0 0.0
        %1070 = vmatprep.subr.mxu0 0.0
        %1071 = vmatpush1.msra.mxu0 0.0
        %1072 = vmatprep.subr.mxu0 0.0
        %1073 = vmatpush1.msra.mxu0 0.0
        %1074 = vmatprep.subr.mxu0 0.0
        %1075 = vmatpush1.msra.mxu0 0.0
        %1076 = vmatprep.subr.mxu0 0.0
        %1077 = vmatpush1.msra.mxu0 0.0
        %1078 = vmatprep.subr.mxu0 0.0
        %1079 = vmatpush1.msra.mxu0 0.0
        %1080 = vmatprep.subr.mxu0 0.0
        %1081 = vmatpush1.msra.mxu0 0.0
        %1082 = vmatprep.subr.mxu0 0.0
        %1083 = vmatpush1.msra.mxu0 0.0
        %1084 = vmatprep.subr.mxu0 0.0
        %1085 = vmatpush1.msra.mxu0 0.0
        %1086 = vmatprep.subr.mxu0 0.0
        %1087 = vmatpush1.msra.mxu0 0.0
        %1088 = vmatprep.subr.mxu0 0.0
        %1089 = vmatpush1.msra.mxu0 0.0
        %1090 = vmatprep.subr.mxu0 0.0
        %1091 = vmatpush1.msra.mxu0 0.0
        %1092 = vmatprep.subr.mxu0 0.0
        %1093 = vmatpush1.msra.mxu0 0.0
        %1094 = vmatprep.subr.mxu0 0.0
        %1095 = vmatpush1.msra.mxu0 0.0
        %1096 = vmatprep.subr.mxu0 0.0
        %1097 = vmatpush1.msra.mxu0 0.0
        %1098 = vmatprep.subr.mxu0 0.0
        %1099 = vmatpush1.msra.mxu0 0.0
        %1100 = vmatprep.subr.mxu0 0.0
        %1101 = vmatpush1.msra.mxu0 0.0
        %1102 = vmatprep.subr.mxu0 0.0
        %1103 = vmatpush1.msra.mxu0 0.0
        %1104 = vmatprep.mubr.f32.mxu0 0.0
        %1105 = vmatmul.mubr.f32.gmra.mrb[0].mxu0 %v1013
        %v1106 = vpop.f32.mrb[0].mxu0
        %v1107 = vadd.f32 0.0, %v1106
        %v1108 = vpop.f32.mrb[0].mxu0
        %v1109 = vadd.f32 0.0, %v1108
        %1110 = vmatprep.mubr.f32.mxu0 0.0
        %1111 = vmatmul.mubr.f32.gmra.mrb[0].mxu0 %v1016
        %v1112 = vpop.f32.mrb[0].mxu0
        %v1113 = vpop.f32.mrb[0].mxu0
        %1114 = vdwg.mxu0
        %1115 = vmatprep.subr.mxu0 %v965
        %1116 = vmatpush1.msra.mxu0 %v964
        %1117 = vmatprep.subr.mxu0 %v972
        %1118 = vmatpush1.msra.mxu0 %v971
        %1119 = vmatprep.subr.mxu0 %v979
        %1120 = vmatpush1.msra.mxu0 %v978
        %1121 = vmatprep.subr.mxu0 %v986
        %1122 = vmatpush1.msra.mxu0 %v985
        %1123 = vmatprep.subr.mxu0 %v993
        %1124 = vmatpush1.msra.mxu0 %v992
        %1125 = vmatprep.subr.mxu0 %v1000
        %1126 = vmatpush1.msra.mxu0 %v999
        %1127 = vmatprep.subr.mxu0 %v1029
        %1128 = vmatpush1.msra.mxu0 %v1026
        %1129 = vmatprep.subr.mxu0 0.0
        %1130 = vmatpush1.msra.mxu0 0.0
        %1131 = vmatprep.subr.mxu0 0.0
        %1132 = vmatpush1.msra.mxu0 0.0
        %1133 = vmatprep.subr.mxu0 0.0
        %1134 = vmatpush1.msra.mxu0 0.0
        %1135 = vmatprep.subr.mxu0 0.0
        %1136 = vmatpush1.msra.mxu0 0.0
        %1137 = vmatprep.subr.mxu0 0.0
        %1138 = vmatpush1.msra.mxu0 0.0
        %1139 = vmatprep.subr.mxu0 0.0
        %1140 = vmatpush1.msra.mxu0 0.0
        %1141 = vmatprep.subr.mxu0 0.0
        %1142 = vmatpush1.msra.mxu0 0.0
        %1143 = vmatprep.subr.mxu0 0.0
        %1144 = vmatpush1.msra.mxu0 0.0
        %1145 = vmatprep.subr.mxu0 0.0
        %1146 = vmatpush1.msra.mxu0 0.0
        %1147 = vmatprep.subr.mxu0 0.0
        %1148 = vmatpush1.msra.mxu0 0.0
        %1149 = vmatprep.subr.mxu0 0.0
        %1150 = vmatpush1.msra.mxu0 0.0
        %1151 = vmatprep.subr.mxu0 0.0
        %1152 = vmatpush1.msra.mxu0 0.0
        %1153 = vmatprep.subr.mxu0 0.0
        %1154 = vmatpush1.msra.mxu0 0.0
        %1155 = vmatprep.subr.mxu0 0.0
        %1156 = vmatpush1.msra.mxu0 0.0
        %1157 = vmatprep.subr.mxu0 0.0
        %1158 = vmatpush1.msra.mxu0 0.0
        %1159 = vmatprep.subr.mxu0 0.0
        %1160 = vmatpush1.msra.mxu0 0.0
        %1161 = vmatprep.subr.mxu0 0.0
        %1162 = vmatpush1.msra.mxu0 0.0
        %1163 = vmatprep.subr.mxu0 0.0
        %1164 = vmatpush1.msra.mxu0 0.0
        %1165 = vmatprep.subr.mxu0 0.0
        %1166 = vmatpush1.msra.mxu0 0.0
        %1167 = vmatprep.subr.mxu0 0.0
        %1168 = vmatpush1.msra.mxu0 0.0
        %1169 = vmatprep.subr.mxu0 0.0
        %1170 = vmatpush1.msra.mxu0 0.0
        %1171 = vmatprep.subr.mxu0 0.0
        %1172 = vmatpush1.msra.mxu0 0.0
        %1173 = vmatprep.subr.mxu0 0.0
        %1174 = vmatpush1.msra.mxu0 0.0
        %1175 = vmatprep.subr.mxu0 0.0
        %1176 = vmatpush1.msra.mxu0 0.0
        %1177 = vmatprep.subr.mxu0 0.0
        %1178 = vmatpush1.msra.mxu0 0.0
        %1179 = vmatprep.mubr.f32.mxu0 0.0
        %1180 = vmatmul.mubr.f32.gmra.mrb[0].mxu0 %v1013
        %v1181 = vpop.f32.mrb[0].mxu0
        %v1182 = vadd.f32 0.0, %v1181
        %v1183 = vpop.f32.mrb[0].mxu0
        %v1184 = vadd.f32 0.0, %v1183
        %1185 = vmatprep.mubr.f32.mxu0 0.0
        %1186 = vmatmul.mubr.f32.gmra.mrb[0].mxu0 %v1016
        %v1187 = vpop.f32.mrb[0].mxu0
        %v1188 = vpop.f32.mrb[0].mxu0
        %1189 = vdwg.mxu0
        %1190 = vmatprep.subr.mxu0 %v967
        %1191 = vmatpush1.msra.mxu0 %v966
        %1192 = vmatprep.subr.mxu0 %v974
        %1193 = vmatpush1.msra.mxu0 %v973
        %1194 = vmatprep.subr.mxu0 %v981
        %1195 = vmatpush1.msra.mxu0 %v980
        %1196 = vmatprep.subr.mxu0 %v988
        %1197 = vmatpush1.msra.mxu0 %v987
        %1198 = vmatprep.subr.mxu0 %v995
        %1199 = vmatpush1.msra.mxu0 %v994
        %1200 = vmatprep.subr.mxu0 %v1002
        %1201 = vmatpush1.msra.mxu0 %v1001
        %1202 = vmatprep.subr.mxu0 %v1035
        %1203 = vmatpush1.msra.mxu0 %v1032
        %1204 = vmatprep.subr.mxu0 0.0
        %1205 = vmatpush1.msra.mxu0 0.0
        %1206 = vmatprep.subr.mxu0 0.0
        %1207 = vmatpush1.msra.mxu0 0.0
        %1208 = vmatprep.subr.mxu0 0.0
        %1209 = vmatpush1.msra.mxu0 0.0
        %1210 = vmatprep.subr.mxu0 0.0
        %1211 = vmatpush1.msra.mxu0 0.0
        %1212 = vmatprep.subr.mxu0 0.0
        %1213 = vmatpush1.msra.mxu0 0.0
        %1214 = vmatprep.subr.mxu0 0.0
        %1215 = vmatpush1.msra.mxu0 0.0
        %1216 = vmatprep.subr.mxu0 0.0
        %1217 = vmatpush1.msra.mxu0 0.0
        %1218 = vmatprep.subr.mxu0 0.0
        %1219 = vmatpush1.msra.mxu0 0.0
        %1220 = vmatprep.subr.mxu0 0.0
        %1221 = vmatpush1.msra.mxu0 0.0
        %1222 = vmatprep.subr.mxu0 0.0
        %1223 = vmatpush1.msra.mxu0 0.0
        %1224 = vmatprep.subr.mxu0 0.0
        %1225 = vmatpush1.msra.mxu0 0.0
        %1226 = vmatprep.subr.mxu0 0.0
        %1227 = vmatpush1.msra.mxu0 0.0
        %1228 = vmatprep.subr.mxu0 0.0
        %1229 = vmatpush1.msra.mxu0 0.0
        %1230 = vmatprep.subr.mxu0 0.0
        %1231 = vmatpush1.msra.mxu0 0.0
        %1232 = vmatprep.subr.mxu0 0.0
        %1233 = vmatpush1.msra.mxu0 0.0
        %1234 = vmatprep.subr.mxu0 0.0
        %1235 = vmatpush1.msra.mxu0 0.0
        %1236 = vmatprep.subr.mxu0 0.0
        %1237 = vmatpush1.msra.mxu0 0.0
        %1238 = vmatprep.subr.mxu0 0.0
        %1239 = vmatpush1.msra.mxu0 0.0
        %1240 = vmatprep.subr.mxu0 0.0
        %1241 = vmatpush1.msra.mxu0 0.0
        %1242 = vmatprep.subr.mxu0 0.0
        %1243 = vmatpush1.msra.mxu0 0.0
        %1244 = vmatprep.subr.mxu0 0.0
        %1245 = vmatpush1.msra.mxu0 0.0
        %1246 = vmatprep.subr.mxu0 0.0
        %1247 = vmatpush1.msra.mxu0 0.0
        %1248 = vmatprep.subr.mxu0 0.0
        %1249 = vmatpush1.msra.mxu0 0.0
        %1250 = vmatprep.subr.mxu0 0.0
        %1251 = vmatpush1.msra.mxu0 0.0
        %1252 = vmatprep.subr.mxu0 0.0
        %1253 = vmatpush1.msra.mxu0 0.0
        %1254 = vmatprep.mubr.f32.mxu0 0.0
        %1255 = vmatmul.mubr.f32.gmra.mrb[0].mxu0 %v1013
        %v1256 = vpop.f32.mrb[0].mxu0
        %v1257 = vpop.f32.mrb[0].mxu0
        %1258 = vmatprep.mubr.f32.mxu0 0.0
        %1259 = vmatmul.mubr.f32.gmra.mrb[0].mxu0 %v1016
        %v1260 = vpop.f32.mrb[0].mxu0
        %v1261 = vadd.f32 0.0, %v1260
        %v1262 = vpop.f32.mrb[0].mxu0
        %v1263 = vadd.f32 0.0, %v1262
        %1264 = vdwg.mxu0
        %1265 = vmatprep.subr.mxu0 0.0
        %1266 = vmatpush1.msra.mxu0 %v968
        %1267 = vmatprep.subr.mxu0 0.0
        %1268 = vmatpush1.msra.mxu0 %v975
        %1269 = vmatprep.subr.mxu0 0.0
        %1270 = vmatpush1.msra.mxu0 %v982
        %1271 = vmatprep.subr.mxu0 0.0
        %1272 = vmatpush1.msra.mxu0 %v989
        %1273 = vmatprep.subr.mxu0 0.0
        %1274 = vmatpush1.msra.mxu0 %v996
        %1275 = vmatprep.subr.mxu0 0.0
        %1276 = vmatpush1.msra.mxu0 %v1003
        %1277 = vmatprep.subr.mxu0 0.0
        %1278 = vmatpush1.msra.mxu0 %v1038
        %1279 = vmatprep.subr.mxu0 0.0
        %1280 = vmatpush1.msra.mxu0 0.0
        %1281 = vmatprep.subr.mxu0 0.0
        %1282 = vmatpush1.msra.mxu0 0.0
        %1283 = vmatprep.subr.mxu0 0.0
        %1284 = vmatpush1.msra.mxu0 0.0
        %1285 = vmatprep.subr.mxu0 0.0
        %1286 = vmatpush1.msra.mxu0 0.0
        %1287 = vmatprep.subr.mxu0 0.0
        %1288 = vmatpush1.msra.mxu0 0.0
        %1289 = vmatprep.subr.mxu0 0.0
        %1290 = vmatpush1.msra.mxu0 0.0
        %1291 = vmatprep.subr.mxu0 0.0
        %1292 = vmatpush1.msra.mxu0 0.0
        %1293 = vmatprep.subr.mxu0 0.0
        %1294 = vmatpush1.msra.mxu0 0.0
        %1295 = vmatprep.subr.mxu0 0.0
        %1296 = vmatpush1.msra.mxu0 0.0
        %1297 = vmatprep.subr.mxu0 0.0
        %1298 = vmatpush1.msra.mxu0 0.0
        %1299 = vmatprep.subr.mxu0 0.0
        %1300 = vmatpush1.msra.mxu0 0.0
        %1301 = vmatprep.subr.mxu0 0.0
        %1302 = vmatpush1.msra.mxu0 0.0
        %1303 = vmatprep.subr.mxu0 0.0
        %1304 = vmatpush1.msra.mxu0 0.0
        %1305 = vmatprep.subr.mxu0 0.0
        %1306 = vmatpush1.msra.mxu0 0.0
        %1307 = vmatprep.subr.mxu0 0.0
        %1308 = vmatpush1.msra.mxu0 0.0
        %1309 = vmatprep.subr.mxu0 0.0
        %1310 = vmatpush1.msra.mxu0 0.0
        %1311 = vmatprep.subr.mxu0 0.0
        %1312 = vmatpush1.msra.mxu0 0.0
        %1313 = vmatprep.subr.mxu0 0.0
        %1314 = vmatpush1.msra.mxu0 0.0
        %1315 = vmatprep.subr.mxu0 0.0
        %1316 = vmatpush1.msra.mxu0 0.0
        %1317 = vmatprep.subr.mxu0 0.0
        %1318 = vmatpush1.msra.mxu0 0.0
        %1319 = vmatprep.subr.mxu0 0.0
        %1320 = vmatpush1.msra.mxu0 0.0
        %1321 = vmatprep.subr.mxu0 0.0
        %1322 = vmatpush1.msra.mxu0 0.0
        %1323 = vmatprep.subr.mxu0 0.0
        %1324 = vmatpush1.msra.mxu0 0.0
        %1325 = vmatprep.subr.mxu0 0.0
        %1326 = vmatpush1.msra.mxu0 0.0
        %1327 = vmatprep.subr.mxu0 0.0
        %1328 = vmatpush1.msra.mxu0 0.0
        %1329 = vmatprep.mubr.f32.mxu0 0.0
        %1330 = vmatmul.mubr.f32.gmra.mrb[0].mxu0 %v1013
        %v1331 = vpop.f32.mrb[0].mxu0
        %v1332 = vpop.f32.mrb[0].mxu0
        %1333 = vmatprep.mubr.f32.mxu0 0.0
        %1334 = vmatmul.mubr.f32.gmra.mrb[0].mxu0 %v1016
        %v1335 = vpop.f32.mrb[0].mxu0
        %v1336 = vadd.f32 0.0, %v1335
        %v1337 = vpop.f32.mrb[0].mxu0
        %1338 = vdwg.mxu0
        %v1339 = vld [vmem:[%s5] sm:$0xff]
        %v1340 = vld [vmem:[%s5 + $0x8] sm:$0xf]
        %v1343 = vcombine.high %v1339, %v1339
        %v1345 = vsel %vm417, %v406, 0
        %v1348 = vsel %vm417, %v407, 0
        %v1350 = vsel %vm466, %v1339, 0
        %v1352 = vsel %vm466, %v1343, 0
        %v1354 = vsel %vm466, %v1340, 0
        %1356 = vmatprep.subr.mxu0 %v1352
        %1357 = vmatpush1.msra.mxu0 %v1350
        %1358 = vmatprep.subr.mxu0 0.0
        %1359 = vmatpush1.msra.mxu0 0.0
        %1360 = vmatprep.subr.mxu0 0.0
        %1361 = vmatpush1.msra.mxu0 0.0
        %1362 = vmatprep.subr.mxu0 0.0
        %1363 = vmatpush1.msra.mxu0 0.0
        %1364 = vmatprep.subr.mxu0 0.0
        %1365 = vmatpush1.msra.mxu0 0.0
        %1366 = vmatprep.subr.mxu0 0.0
        %1367 = vmatpush1.msra.mxu0 0.0
        %1368 = vmatprep.subr.mxu0 0.0
        %1369 = vmatpush1.msra.mxu0 0.0
        %1370 = vmatprep.subr.mxu0 0.0
        %1371 = vmatpush1.msra.mxu0 0.0
        %1372 = vmatprep.subr.mxu0 0.0
        %1373 = vmatpush1.msra.mxu0 0.0
        %1374 = vmatprep.subr.mxu0 0.0
        %1375 = vmatpush1.msra.mxu0 0.0
        %1376 = vmatprep.subr.mxu0 0.0
        %1377 = vmatpush1.msra.mxu0 0.0
        %1378 = vmatprep.subr.mxu0 0.0
        %1379 = vmatpush1.msra.mxu0 0.0
        %1380 = vmatprep.subr.mxu0 0.0
        %1381 = vmatpush1.msra.mxu0 0.0
        %1382 = vmatprep.subr.mxu0 0.0
        %1383 = vmatpush1.msra.mxu0 0.0
        %1384 = vmatprep.subr.mxu0 0.0
        %1385 = vmatpush1.msra.mxu0 0.0
        %1386 = vmatprep.subr.mxu0 0.0
        %1387 = vmatpush1.msra.mxu0 0.0
        %1388 = vmatprep.subr.mxu0 0.0
        %1389 = vmatpush1.msra.mxu0 0.0
        %1390 = vmatprep.subr.mxu0 0.0
        %1391 = vmatpush1.msra.mxu0 0.0
        %1392 = vmatprep.subr.mxu0 0.0
        %1393 = vmatpush1.msra.mxu0 0.0
        %1394 = vmatprep.subr.mxu0 0.0
        %1395 = vmatpush1.msra.mxu0 0.0
        %1396 = vmatprep.subr.mxu0 0.0
        %1397 = vmatpush1.msra.mxu0 0.0
        %1398 = vmatprep.subr.mxu0 0.0
        %1399 = vmatpush1.msra.mxu0 0.0
        %1400 = vmatprep.subr.mxu0 0.0
        %1401 = vmatpush1.msra.mxu0 0.0
        %1402 = vmatprep.subr.mxu0 0.0
        %1403 = vmatpush1.msra.mxu0 0.0
        %1404 = vmatprep.subr.mxu0 0.0
        %1405 = vmatpush1.msra.mxu0 0.0
        %1406 = vmatprep.subr.mxu0 0.0
        %1407 = vmatpush1.msra.mxu0 0.0
        %1408 = vmatprep.subr.mxu0 0.0
        %1409 = vmatpush1.msra.mxu0 0.0
        %1410 = vmatprep.subr.mxu0 0.0
        %1411 = vmatpush1.msra.mxu0 0.0
        %1412 = vmatprep.subr.mxu0 0.0
        %1413 = vmatpush1.msra.mxu0 0.0
        %1414 = vmatprep.subr.mxu0 0.0
        %1415 = vmatpush1.msra.mxu0 0.0
        %1416 = vmatprep.subr.mxu0 0.0
        %1417 = vmatpush1.msra.mxu0 0.0
        %1418 = vmatprep.subr.mxu0 0.0
        %1419 = vmatpush1.msra.mxu0 0.0
        %1420 = vmatprep.mubr.f32.mxu0 0.0
        %1421 = vmatmul.mubr.f32.gmra.mrb[0].mxu0 %v1345
        %v1422 = vpop.f32.mrb[0].mxu0
        %v1423 = vadd.f32 0.0, %v1422
        %v1424 = vpop.f32.mrb[0].mxu0
        %v1425 = vadd.f32 0.0, %v1424
        %1426 = vmatprep.mubr.f32.mxu0 0.0
        %1427 = vmatmul.mubr.f32.gmra.mrb[0].mxu0 %v1348
        %v1428 = vpop.f32.mrb[0].mxu0
        %v1429 = vadd.f32 0.0, %v1428
        %v1430 = vpop.f32.mrb[0].mxu0
        %v1431 = vadd.f32 0.0, %v1430
        %1432 = vdwg.mxu0
        %1433 = vmatprep.subr.mxu0 0.0
        %1434 = vmatpush1.msra.mxu0 %v1354
        %1435 = vmatprep.subr.mxu0 0.0
        %1436 = vmatpush1.msra.mxu0 0.0
        %1437 = vmatprep.subr.mxu0 0.0
        %1438 = vmatpush1.msra.mxu0 0.0
        %1439 = vmatprep.subr.mxu0 0.0
        %1440 = vmatpush1.msra.mxu0 0.0
        %1441 = vmatprep.subr.mxu0 0.0
        %1442 = vmatpush1.msra.mxu0 0.0
        %1443 = vmatprep.subr.mxu0 0.0
        %1444 = vmatpush1.msra.mxu0 0.0
        %1445 = vmatprep.subr.mxu0 0.0
        %1446 = vmatpush1.msra.mxu0 0.0
        %1447 = vmatprep.subr.mxu0 0.0
        %1448 = vmatpush1.msra.mxu0 0.0
        %1449 = vmatprep.subr.mxu0 0.0
        %1450 = vmatpush1.msra.mxu0 0.0
        %1451 = vmatprep.subr.mxu0 0.0
        %1452 = vmatpush1.msra.mxu0 0.0
        %1453 = vmatprep.subr.mxu0 0.0
        %1454 = vmatpush1.msra.mxu0 0.0
        %1455 = vmatprep.subr.mxu0 0.0
        %1456 = vmatpush1.msra.mxu0 0.0
        %1457 = vmatprep.subr.mxu0 0.0
        %1458 = vmatpush1.msra.mxu0 0.0
        %1459 = vmatprep.subr.mxu0 0.0
        %1460 = vmatpush1.msra.mxu0 0.0
        %1461 = vmatprep.subr.mxu0 0.0
        %1462 = vmatpush1.msra.mxu0 0.0
        %1463 = vmatprep.subr.mxu0 0.0
        %1464 = vmatpush1.msra.mxu0 0.0
        %1465 = vmatprep.subr.mxu0 0.0
        %1466 = vmatpush1.msra.mxu0 0.0
        %1467 = vmatprep.subr.mxu0 0.0
        %1468 = vmatpush1.msra.mxu0 0.0
        %1469 = vmatprep.subr.mxu0 0.0
        %1470 = vmatpush1.msra.mxu0 0.0
        %1471 = vmatprep.subr.mxu0 0.0
        %1472 = vmatpush1.msra.mxu0 0.0
        %1473 = vmatprep.subr.mxu0 0.0
        %1474 = vmatpush1.msra.mxu0 0.0
        %1475 = vmatprep.subr.mxu0 0.0
        %1476 = vmatpush1.msra.mxu0 0.0
        %1477 = vmatprep.subr.mxu0 0.0
        %1478 = vmatpush1.msra.mxu0 0.0
        %1479 = vmatprep.subr.mxu0 0.0
        %1480 = vmatpush1.msra.mxu0 0.0
        %1481 = vmatprep.subr.mxu0 0.0
        %1482 = vmatpush1.msra.mxu0 0.0
        %1483 = vmatprep.subr.mxu0 0.0
        %1484 = vmatpush1.msra.mxu0 0.0
        %1485 = vmatprep.subr.mxu0 0.0
        %1486 = vmatpush1.msra.mxu0 0.0
        %1487 = vmatprep.subr.mxu0 0.0
        %1488 = vmatpush1.msra.mxu0 0.0
        %1489 = vmatprep.subr.mxu0 0.0
        %1490 = vmatpush1.msra.mxu0 0.0
        %1491 = vmatprep.subr.mxu0 0.0
        %1492 = vmatpush1.msra.mxu0 0.0
        %1493 = vmatprep.subr.mxu0 0.0
        %1494 = vmatpush1.msra.mxu0 0.0
        %1495 = vmatprep.subr.mxu0 0.0
        %1496 = vmatpush1.msra.mxu0 0.0
        %1497 = vmatprep.mubr.f32.mxu0 0.0
        %1498 = vmatmul.mubr.f32.gmra.mrb[0].mxu0 %v1345
        %v1499 = vpop.f32.mrb[0].mxu0
        %v1500 = vadd.f32 0.0, %v1499
        %v1501 = vpop.f32.mrb[0].mxu0
        %1502 = vmatprep.mubr.f32.mxu0 0.0
        %1503 = vmatmul.mubr.f32.gmra.mrb[0].mxu0 %v1348
        %v1504 = vpop.f32.mrb[0].mxu0
        %v1505 = vadd.f32 0.0, %v1504
        %v1506 = vpop.f32.mrb[0].mxu0
        %1507 = vdwg.mxu0
        %v1508 = vlaneseq
        %v1509 = vshrl.u32 %v1508, 7
        %v1510 = vsub.s32 0, %v1509
        %v1511 = vrot.slane %v1261, %v1510
        %v1512 = vsub.f32 %v1511, %v1423
        %v1513 = vsub.f32 %v1511, %v1429
        %v1514 = vtanh.pop %v1512
        %v1515 = vtanh.pop %v1513
        %v1516 = vld [vmem:[#allocation5] sm:$0xff]
        %v1517 = vld [vmem:[#allocation5 + $0x8] sm:$0xff]
        %v1518 = vld [vmem:[#allocation5 + $0x10] sm:$0xff]
        %v1519 = vld [vmem:[#allocation5 + $0x18] sm:$0xff]
        %v1520 = vld [vmem:[#allocation5 + $0x20] sm:$0xff]
        %v1521 = vld [vmem:[#allocation5 + $0x28] sm:$0xff]
        %v1522 = vld [vmem:[#allocation5 + $0x30] sm:$0xff]
        %v1523 = vld [vmem:[#allocation5 + $0x38] sm:$0xff]
        %v1524 = vld [vmem:[#allocation5 + $0x40] sm:$0xff]
        %v1525 = vld [vmem:[#allocation5 + $0x48] sm:$0xff]
        %v1526 = vld [vmem:[#allocation5 + $0x50] sm:$0xff]
        %v1527 = vld [vmem:[#allocation5 + $0x58] sm:$0xff]
        %v1528 = vld [vmem:[#allocation5 + $0x60] sm:$0xff]
        %v1529 = vld [vmem:[#allocation5 + $0x68] sm:$0xff]
        %v1530 = vld [vmem:[#allocation5 + $0x70] sm:$0xff]
        %v1531 = vld [vmem:[#allocation5 + $0x78] sm:$0xff]
        %v1532 = vld [vmem:[#allocation5 + $0x80] sm:$0xff]
        %v1533 = vld [vmem:[#allocation5 + $0x88] sm:$0xff]
        %v1534 = vld [vmem:[#allocation5 + $0x90] sm:$0xff]
        %v1535 = vld [vmem:[#allocation5 + $0x98] sm:$0xff]
        %v1536 = vld [vmem:[#allocation5 + $0xa0] sm:$0xff]
        %v1537 = vld [vmem:[#allocation5 + $0xa8] sm:$0xff]
        %v1538 = vld [vmem:[#allocation5 + $0xb0] sm:$0xff]
        %v1539 = vld [vmem:[#allocation5 + $0xb8] sm:$0xff]
        %v1540 = vld [vmem:[#allocation5 + $0xc0] sm:$0xff]
        %v1541 = vld [vmem:[#allocation5 + $0xc8] sm:$0xff]
        %v1542 = vld [vmem:[#allocation5 + $0xd0] sm:$0xff]
        %v1543 = vld [vmem:[#allocation5 + $0xd8] sm:$0xff]
        %v1544 = vld [vmem:[#allocation5 + $0xe0] sm:$0xff]
        %v1545 = vld [vmem:[#allocation5 + $0xe8] sm:$0xff]
        %v1546 = vld [vmem:[#allocation5 + $0xf0] sm:$0xff]
        %v1547 = vld [vmem:[#allocation5 + $0xf8] sm:$0xff]
        %v1548 = vld [vmem:[#allocation5 + $0x100] sm:$0xff]
        %v1549 = vld [vmem:[#allocation5 + $0x108] sm:$0xff]
        %v1550 = vld [vmem:[#allocation5 + $0x110] sm:$0xff]
        %v1551 = vld [vmem:[#allocation5 + $0x118] sm:$0xff]
        %1552 = vmatprep.subr.mxu0 %v1517
        %1553 = vmatpush1.msra.mxu0 %v1516
        %1554 = vmatprep.subr.mxu0 %v1519
        %1555 = vmatpush1.msra.mxu0 %v1518
        %1556 = vmatprep.subr.mxu0 %v1521
        %1557 = vmatpush1.msra.mxu0 %v1520
        %1558 = vmatprep.subr.mxu0 %v1523
        %1559 = vmatpush1.msra.mxu0 %v1522
        %1560 = vmatprep.subr.mxu0 %v1525
        %1561 = vmatpush1.msra.mxu0 %v1524
        %1562 = vmatprep.subr.mxu0 %v1527
        %1563 = vmatpush1.msra.mxu0 %v1526
        %1564 = vmatprep.subr.mxu0 %v1529
        %1565 = vmatpush1.msra.mxu0 %v1528
        %1566 = vmatprep.subr.mxu0 %v1531
        %1567 = vmatpush1.msra.mxu0 %v1530
        %1568 = vmatprep.subr.mxu0 %v1533
        %1569 = vmatpush1.msra.mxu0 %v1532
        %1570 = vmatprep.subr.mxu0 %v1535
        %1571 = vmatpush1.msra.mxu0 %v1534
        %1572 = vmatprep.subr.mxu0 %v1537
        %1573 = vmatpush1.msra.mxu0 %v1536
        %1574 = vmatprep.subr.mxu0 %v1539
        %1575 = vmatpush1.msra.mxu0 %v1538
        %1576 = vmatprep.subr.mxu0 %v1541
        %1577 = vmatpush1.msra.mxu0 %v1540
        %1578 = vmatprep.subr.mxu0 %v1543
        %1579 = vmatpush1.msra.mxu0 %v1542
        %1580 = vmatprep.subr.mxu0 %v1545
        %1581 = vmatpush1.msra.mxu0 %v1544
        %1582 = vmatprep.subr.mxu0 %v1547
        %1583 = vmatpush1.msra.mxu0 %v1546
        %1584 = vmatprep.subr.mxu0 0.0
        %1585 = vmatpush1.msra.mxu0 0.0
        %1586 = vmatprep.subr.mxu0 0.0
        %1587 = vmatpush1.msra.mxu0 0.0
        %1588 = vmatprep.subr.mxu0 0.0
        %1589 = vmatpush1.msra.mxu0 0.0
        %1590 = vmatprep.subr.mxu0 0.0
        %1591 = vmatpush1.msra.mxu0 0.0
        %1592 = vmatprep.subr.mxu0 0.0
        %1593 = vmatpush1.msra.mxu0 0.0
        %1594 = vmatprep.subr.mxu0 0.0
        %1595 = vmatpush1.msra.mxu0 0.0
        %1596 = vmatprep.subr.mxu0 0.0
        %1597 = vmatpush1.msra.mxu0 0.0
        %1598 = vmatprep.subr.mxu0 0.0
        %1599 = vmatpush1.msra.mxu0 0.0
        %1600 = vmatprep.subr.mxu0 0.0
        %1601 = vmatpush1.msra.mxu0 0.0
        %1602 = vmatprep.subr.mxu0 0.0
        %1603 = vmatpush1.msra.mxu0 0.0
        %1604 = vmatprep.subr.mxu0 0.0
        %1605 = vmatpush1.msra.mxu0 0.0
        %1606 = vmatprep.subr.mxu0 0.0
        %1607 = vmatpush1.msra.mxu0 0.0
        %1608 = vmatprep.subr.mxu0 0.0
        %1609 = vmatpush1.msra.mxu0 0.0
        %1610 = vmatprep.subr.mxu0 0.0
        %1611 = vmatpush1.msra.mxu0 0.0
        %1612 = vmatprep.subr.mxu0 0.0
        %1613 = vmatpush1.msra.mxu0 0.0
        %1614 = vmatprep.subr.mxu0 0.0
        %1615 = vmatpush1.msra.mxu0 0.0
        %1616 = vmatprep.mubr.f32.mxu0 0.0
        %1617 = vmatmul.mubr.f32.gmra.mrb[0].mxu0 %v1514
        %v1618 = vpop.f32.mrb[0].mxu0
        %v1619 = vadd.f32 %v1548, %v1618
        %v1620 = vpop.f32.mrb[0].mxu0
        %v1621 = vadd.f32 %v1549, %v1620
        %1622 = vmatprep.mubr.f32.mxu0 0.0
        %1623 = vmatmul.mubr.f32.gmra.mrb[0].mxu0 %v1515
        %v1624 = vpop.f32.mrb[0].mxu0
        %v1625 = vadd.f32 %v1550, %v1624
        %v1626 = vpop.f32.mrb[0].mxu0
        %v1627 = vadd.f32 %v1551, %v1626
        %1628 = vdwg.mxu0
        %v1629 = vmul.f32 %v546, %v1619
        %v1630 = vmul.f32 %v548, %v1621
        %v1631 = vmul.f32 %v552, %v1625
        %v1632 = vmul.f32 %v554, %v1627
        %v1633 = vmul.f32 %v558, %v1619
        %v1634 = vmul.f32 %v560, %v1621
        %v1635 = vmul.f32 %v564, %v1625
        %v1636 = vmul.f32 %v566, %v1627
        %v1637 = vmul.f32 %v570, %v1619
        %v1638 = vmul.f32 %v572, %v1621
        %v1639 = vmul.f32 %v576, %v1625
        %v1640 = vmul.f32 %v578, %v1627
        %v1641 = vmul.f32 %v582, %v1619
        %v1642 = vmul.f32 %v584, %v1621
        %v1643 = vmul.f32 %v588, %v1625
        %v1644 = vmul.f32 %v590, %v1627
        %v1645 = vmul.f32 %v594, %v1619
        %v1646 = vmul.f32 %v596, %v1621
        %v1647 = vmul.f32 %v600, %v1625
        %v1648 = vmul.f32 %v602, %v1627
        %v1649 = vmul.f32 %v606, %v1619
        %v1650 = vmul.f32 %v608, %v1621
        %v1651 = vmul.f32 %v612, %v1625
        %v1652 = vmul.f32 %v614, %v1627
        %v1653 = vmul.f32 %v618, %v1619
        %v1654 = vmul.f32 %v620, %v1621
        %v1655 = vmul.f32 %v624, %v1625
        %v1656 = vmul.f32 %v626, %v1627
        %v1657 = vmul.f32 %v630, %v1619
        %v1658 = vmul.f32 %v632, %v1621
        %v1659 = vmul.f32 %v636, %v1625
        %v1660 = vmul.f32 %v638, %v1627
        %v1661 = vadd.f32 %v1629, %v1631
        %v1662 = vrot.slane %v1661, 4
        %v1663 = vadd.f32 %v1661, %v1662
        %v1664 = vrot.slane %v1663, 2
        %v1665 = vadd.f32 %v1663, %v1664
        %v1666 = vrot.slane %v1665, 1
        %v1667 = vadd.f32 %v1665, %v1666
        %v1668 = vadd.f32 %v1630, %v1632
        %v1669 = vrot.slane %v1668, 4
        %v1670 = vadd.f32 %v1668, %v1669
        %v1671 = vrot.slane %v1670, 2
        %v1672 = vadd.f32 %v1670, %v1671
        %v1673 = vrot.slane %v1672, 1
        %v1674 = vadd.f32 %v1672, %v1673
        %v1675 = vadd.f32 %v1633, %v1635
        %v1676 = vrot.slane %v1675, 4
        %v1677 = vadd.f32 %v1675, %v1676
        %v1678 = vrot.slane %v1677, 2
        %v1679 = vadd.f32 %v1677, %v1678
        %v1680 = vrot.slane %v1679, 1
        %v1681 = vadd.f32 %v1679, %v1680
        %v1682 = vadd.f32 %v1634, %v1636
        %v1683 = vrot.slane %v1682, 4
        %v1684 = vadd.f32 %v1682, %v1683
        %v1685 = vrot.slane %v1684, 2
        %v1686 = vadd.f32 %v1684, %v1685
        %v1687 = vrot.slane %v1686, 1
        %v1688 = vadd.f32 %v1686, %v1687
        %v1689 = vadd.f32 %v1637, %v1639
        %v1690 = vrot.slane %v1689, 4
        %v1691 = vadd.f32 %v1689, %v1690
        %v1692 = vrot.slane %v1691, 2
        %v1693 = vadd.f32 %v1691, %v1692
        %v1694 = vrot.slane %v1693, 1
        %v1695 = vadd.f32 %v1693, %v1694
        %v1696 = vadd.f32 %v1638, %v1640
        %v1697 = vrot.slane %v1696, 4
        %v1698 = vadd.f32 %v1696, %v1697
        %v1699 = vrot.slane %v1698, 2
        %v1700 = vadd.f32 %v1698, %v1699
        %v1701 = vrot.slane %v1700, 1
        %v1702 = vadd.f32 %v1700, %v1701
        %v1703 = vadd.f32 %v1641, %v1643
        %v1704 = vrot.slane %v1703, 4
        %v1705 = vadd.f32 %v1703, %v1704
        %v1706 = vrot.slane %v1705, 2
        %v1707 = vadd.f32 %v1705, %v1706
        %v1708 = vrot.slane %v1707, 1
        %v1709 = vadd.f32 %v1707, %v1708
        %v1710 = vadd.f32 %v1642, %v1644
        %v1711 = vrot.slane %v1710, 4
        %v1712 = vadd.f32 %v1710, %v1711
        %v1713 = vrot.slane %v1712, 2
        %v1714 = vadd.f32 %v1712, %v1713
        %v1715 = vrot.slane %v1714, 1
        %v1716 = vadd.f32 %v1714, %v1715
        %v1717 = vadd.f32 %v1645, %v1647
        %v1718 = vrot.slane %v1717, 4
        %v1719 = vadd.f32 %v1717, %v1718
        %v1720 = vrot.slane %v1719, 2
        %v1721 = vadd.f32 %v1719, %v1720
        %v1722 = vrot.slane %v1721, 1
        %v1723 = vadd.f32 %v1721, %v1722
        %v1724 = vadd.f32 %v1646, %v1648
        %v1725 = vrot.slane %v1724, 4
        %v1726 = vadd.f32 %v1724, %v1725
        %v1727 = vrot.slane %v1726, 2
        %v1728 = vadd.f32 %v1726, %v1727
        %v1729 = vrot.slane %v1728, 1
        %v1730 = vadd.f32 %v1728, %v1729
        %v1731 = vadd.f32 %v1649, %v1651
        %v1732 = vrot.slane %v1731, 4
        %v1733 = vadd.f32 %v1731, %v1732
        %v1734 = vrot.slane %v1733, 2
        %v1735 = vadd.f32 %v1733, %v1734
        %v1736 = vrot.slane %v1735, 1
        %v1737 = vadd.f32 %v1735, %v1736
        %v1738 = vadd.f32 %v1650, %v1652
        %v1739 = vrot.slane %v1738, 4
        %v1740 = vadd.f32 %v1738, %v1739
        %v1741 = vrot.slane %v1740, 2
        %v1742 = vadd.f32 %v1740, %v1741
        %v1743 = vrot.slane %v1742, 1
        %v1744 = vadd.f32 %v1742, %v1743
        %v1745 = vadd.f32 %v1653, %v1655
        %v1746 = vrot.slane %v1745, 4
        %v1747 = vadd.f32 %v1745, %v1746
        %v1748 = vrot.slane %v1747, 2
        %v1749 = vadd.f32 %v1747, %v1748
        %v1750 = vrot.slane %v1749, 1
        %v1751 = vadd.f32 %v1749, %v1750
        %v1752 = vadd.f32 %v1654, %v1656
        %v1753 = vrot.slane %v1752, 4
        %v1754 = vadd.f32 %v1752, %v1753
        %v1755 = vrot.slane %v1754, 2
        %v1756 = vadd.f32 %v1754, %v1755
        %v1757 = vrot.slane %v1756, 1
        %v1758 = vadd.f32 %v1756, %v1757
        %v1759 = vadd.f32 %v1657, %v1659
        %v1760 = vrot.slane %v1759, 4
        %v1761 = vadd.f32 %v1759, %v1760
        %v1762 = vrot.slane %v1761, 2
        %v1763 = vadd.f32 %v1761, %v1762
        %v1764 = vrot.slane %v1763, 1
        %v1765 = vadd.f32 %v1763, %v1764
        %v1766 = vadd.f32 %v1658, %v1660
        %v1767 = vrot.slane %v1766, 4
        %v1768 = vadd.f32 %v1766, %v1767
        %v1769 = vrot.slane %v1768, 2
        %v1770 = vadd.f32 %v1768, %v1769
        %v1771 = vrot.slane %v1770, 1
        %v1772 = vadd.f32 %v1770, %v1771
        %v1773 = vadd.f32 %v1667, 0.0
        %v1774 = vadd.f32 %v1674, 0.0
        %v1775 = vadd.f32 %v1681, 0.0
        %v1776 = vadd.f32 %v1688, 0.0
        %v1777 = vadd.f32 %v1695, 0.0
        %v1778 = vadd.f32 %v1702, 0.0
        %v1779 = vadd.f32 %v1709, 0.0
        %v1780 = vadd.f32 %v1716, 0.0
        %v1781 = vadd.f32 %v1723, 0.0
        %v1782 = vadd.f32 %v1730, 0.0
        %v1783 = vadd.f32 %v1737, 0.0
        %v1784 = vadd.f32 %v1744, 0.0
        %v1785 = vadd.f32 %v1751, 0.0
        %v1786 = vadd.f32 %v1758, 0.0
        %v1787 = vadd.f32 %v1765, 0.0
        %v1788 = vadd.f32 %v1772, 0.0
        %v1789 = vlaneseq
        %v1790 = vshrl.u32 %v1789, 7
        %v1791 = vsub.s32 0, %v1790
        %v1792 = vrot.slane %v1263, %v1791
        %v1793 = vsub.f32 %v1792, %v1425
        %v1794 = vsub.f32 %v1792, %v1431
        %v1795 = vtanh.pop %v1793
        %v1796 = vtanh.pop %v1794
        %s1797 = scalar_lea.vmem [#allocation5], 288
        %v1798 = vld [vmem:[%s1797] sm:$0xff]
        %v1799 = vld [vmem:[%s1797 + $0x8] sm:$0xff]
        %v1800 = vld [vmem:[%s1797 + $0x10] sm:$0xff]
        %v1801 = vld [vmem:[%s1797 + $0x18] sm:$0xff]
        %v1802 = vld [vmem:[%s1797 + $0x20] sm:$0xff]
        %v1803 = vld [vmem:[%s1797 + $0x28] sm:$0xff]
        %v1804 = vld [vmem:[%s1797 + $0x30] sm:$0xff]
        %v1805 = vld [vmem:[%s1797 + $0x38] sm:$0xff]
        %v1806 = vld [vmem:[%s1797 + $0x40] sm:$0xff]
        %v1807 = vld [vmem:[%s1797 + $0x48] sm:$0xff]
        %v1808 = vld [vmem:[%s1797 + $0x50] sm:$0xff]
        %v1809 = vld [vmem:[%s1797 + $0x58] sm:$0xff]
        %v1810 = vld [vmem:[%s1797 + $0x60] sm:$0xff]
        %v1811 = vld [vmem:[%s1797 + $0x68] sm:$0xff]
        %v1812 = vld [vmem:[%s1797 + $0x70] sm:$0xff]
        %v1813 = vld [vmem:[%s1797 + $0x78] sm:$0xff]
        %v1814 = vld [vmem:[%s1797 + $0x80] sm:$0xff]
        %v1815 = vld [vmem:[%s1797 + $0x88] sm:$0xff]
        %v1816 = vld [vmem:[%s1797 + $0x90] sm:$0xff]
        %v1817 = vld [vmem:[%s1797 + $0x98] sm:$0xff]
        %v1818 = vld [vmem:[%s1797 + $0xa0] sm:$0xff]
        %v1819 = vld [vmem:[%s1797 + $0xa8] sm:$0xff]
        %v1820 = vld [vmem:[%s1797 + $0xb0] sm:$0xff]
        %v1821 = vld [vmem:[%s1797 + $0xb8] sm:$0xff]
        %v1822 = vld [vmem:[%s1797 + $0xc0] sm:$0xff]
        %v1823 = vld [vmem:[%s1797 + $0xc8] sm:$0xff]
        %v1824 = vld [vmem:[%s1797 + $0xd0] sm:$0xff]
        %v1825 = vld [vmem:[%s1797 + $0xd8] sm:$0xff]
        %v1826 = vld [vmem:[%s1797 + $0xe0] sm:$0xff]
        %v1827 = vld [vmem:[%s1797 + $0xe8] sm:$0xff]
        %v1828 = vld [vmem:[%s1797 + $0xf0] sm:$0xff]
        %v1829 = vld [vmem:[%s1797 + $0xf8] sm:$0xff]
        %v1830 = vld [vmem:[%s1797 + $0x100] sm:$0xff]
        %v1831 = vld [vmem:[%s1797 + $0x108] sm:$0xff]
        %v1832 = vld [vmem:[%s1797 + $0x110] sm:$0xff]
        %v1833 = vld [vmem:[%s1797 + $0x118] sm:$0xff]
        %1834 = vmatprep.subr.mxu0 %v1799
        %1835 = vmatpush1.msra.mxu0 %v1798
        %1836 = vmatprep.subr.mxu0 %v1801
        %1837 = vmatpush1.msra.mxu0 %v1800
        %1838 = vmatprep.subr.mxu0 %v1803
        %1839 = vmatpush1.msra.mxu0 %v1802
        %1840 = vmatprep.subr.mxu0 %v1805
        %1841 = vmatpush1.msra.mxu0 %v1804
        %1842 = vmatprep.subr.mxu0 %v1807
        %1843 = vmatpush1.msra.mxu0 %v1806
        %1844 = vmatprep.subr.mxu0 %v1809
        %1845 = vmatpush1.msra.mxu0 %v1808
        %1846 = vmatprep.subr.mxu0 %v1811
        %1847 = vmatpush1.msra.mxu0 %v1810
        %1848 = vmatprep.subr.mxu0 %v1813
        %1849 = vmatpush1.msra.mxu0 %v1812
        %1850 = vmatprep.subr.mxu0 %v1815
        %1851 = vmatpush1.msra.mxu0 %v1814
        %1852 = vmatprep.subr.mxu0 %v1817
        %1853 = vmatpush1.msra.mxu0 %v1816
        %1854 = vmatprep.subr.mxu0 %v1819
        %1855 = vmatpush1.msra.mxu0 %v1818
        %1856 = vmatprep.subr.mxu0 %v1821
        %1857 = vmatpush1.msra.mxu0 %v1820
        %1858 = vmatprep.subr.mxu0 %v1823
        %1859 = vmatpush1.msra.mxu0 %v1822
        %1860 = vmatprep.subr.mxu0 %v1825
        %1861 = vmatpush1.msra.mxu0 %v1824
        %1862 = vmatprep.subr.mxu0 %v1827
        %1863 = vmatpush1.msra.mxu0 %v1826
        %1864 = vmatprep.subr.mxu0 %v1829
        %1865 = vmatpush1.msra.mxu0 %v1828
        %1866 = vmatprep.subr.mxu0 0.0
        %1867 = vmatpush1.msra.mxu0 0.0
        %1868 = vmatprep.subr.mxu0 0.0
        %1869 = vmatpush1.msra.mxu0 0.0
        %1870 = vmatprep.subr.mxu0 0.0
        %1871 = vmatpush1.msra.mxu0 0.0
        %1872 = vmatprep.subr.mxu0 0.0
        %1873 = vmatpush1.msra.mxu0 0.0
        %1874 = vmatprep.subr.mxu0 0.0
        %1875 = vmatpush1.msra.mxu0 0.0
        %1876 = vmatprep.subr.mxu0 0.0
        %1877 = vmatpush1.msra.mxu0 0.0
        %1878 = vmatprep.subr.mxu0 0.0
        %1879 = vmatpush1.msra.mxu0 0.0
        %1880 = vmatprep.subr.mxu0 0.0
        %1881 = vmatpush1.msra.mxu0 0.0
        %1882 = vmatprep.subr.mxu0 0.0
        %1883 = vmatpush1.msra.mxu0 0.0
        %1884 = vmatprep.subr.mxu0 0.0
        %1885 = vmatpush1.msra.mxu0 0.0
        %1886 = vmatprep.subr.mxu0 0.0
        %1887 = vmatpush1.msra.mxu0 0.0
        %1888 = vmatprep.subr.mxu0 0.0
        %1889 = vmatpush1.msra.mxu0 0.0
        %1890 = vmatprep.subr.mxu0 0.0
        %1891 = vmatpush1.msra.mxu0 0.0
        %1892 = vmatprep.subr.mxu0 0.0
        %1893 = vmatpush1.msra.mxu0 0.0
        %1894 = vmatprep.subr.mxu0 0.0
        %1895 = vmatpush1.msra.mxu0 0.0
        %1896 = vmatprep.subr.mxu0 0.0
        %1897 = vmatpush1.msra.mxu0 0.0
        %1898 = vmatprep.mubr.f32.mxu0 0.0
        %1899 = vmatmul.mubr.f32.gmra.mrb[0].mxu0 %v1795
        %v1900 = vpop.f32.mrb[0].mxu0
        %v1901 = vadd.f32 %v1830, %v1900
        %v1902 = vpop.f32.mrb[0].mxu0
        %v1903 = vadd.f32 %v1831, %v1902
        %1904 = vmatprep.mubr.f32.mxu0 0.0
        %1905 = vmatmul.mubr.f32.gmra.mrb[0].mxu0 %v1796
        %v1906 = vpop.f32.mrb[0].mxu0
        %v1907 = vadd.f32 %v1832, %v1906
        %v1908 = vpop.f32.mrb[0].mxu0
        %v1909 = vadd.f32 %v1833, %v1908
        %1910 = vdwg.mxu0
        %v1911 = vmul.f32 %v707, %v1901
        %v1912 = vmul.f32 %v709, %v1903
        %v1913 = vmul.f32 %v713, %v1907
        %v1914 = vmul.f32 %v715, %v1909
        %v1915 = vmul.f32 %v719, %v1901
        %v1916 = vmul.f32 %v721, %v1903
        %v1917 = vmul.f32 %v725, %v1907
        %v1918 = vmul.f32 %v727, %v1909
        %v1919 = vmul.f32 %v731, %v1901
        %v1920 = vmul.f32 %v733, %v1903
        %v1921 = vmul.f32 %v737, %v1907
        %v1922 = vmul.f32 %v739, %v1909
        %v1923 = vmul.f32 %v743, %v1901
        %v1924 = vmul.f32 %v745, %v1903
        %v1925 = vmul.f32 %v749, %v1907
        %v1926 = vmul.f32 %v751, %v1909
        %v1927 = vmul.f32 %v755, %v1901
        %v1928 = vmul.f32 %v757, %v1903
        %v1929 = vmul.f32 %v761, %v1907
        %v1930 = vmul.f32 %v763, %v1909
        %v1931 = vmul.f32 %v767, %v1901
        %v1932 = vmul.f32 %v769, %v1903
        %v1933 = vmul.f32 %v773, %v1907
        %v1934 = vmul.f32 %v775, %v1909
        %v1935 = vmul.f32 %v779, %v1901
        %v1936 = vmul.f32 %v781, %v1903
        %v1937 = vmul.f32 %v785, %v1907
        %v1938 = vmul.f32 %v787, %v1909
        %v1939 = vmul.f32 %v791, %v1901
        %v1940 = vmul.f32 %v793, %v1903
        %v1941 = vmul.f32 %v797, %v1907
        %v1942 = vmul.f32 %v799, %v1909
        %v1943 = vadd.f32 %v1911, %v1913
        %v1944 = vrot.slane %v1943, 4
        %v1945 = vadd.f32 %v1943, %v1944
        %v1946 = vrot.slane %v1945, 2
        %v1947 = vadd.f32 %v1945, %v1946
        %v1948 = vrot.slane %v1947, 1
        %v1949 = vadd.f32 %v1947, %v1948
        %v1950 = vadd.f32 %v1912, %v1914
        %v1951 = vrot.slane %v1950, 4
        %v1952 = vadd.f32 %v1950, %v1951
        %v1953 = vrot.slane %v1952, 2
        %v1954 = vadd.f32 %v1952, %v1953
        %v1955 = vrot.slane %v1954, 1
        %v1956 = vadd.f32 %v1954, %v1955
        %v1957 = vadd.f32 %v1915, %v1917
        %v1958 = vrot.slane %v1957, 4
        %v1959 = vadd.f32 %v1957, %v1958
        %v1960 = vrot.slane %v1959, 2
        %v1961 = vadd.f32 %v1959, %v1960
        %v1962 = vrot.slane %v1961, 1
        %v1963 = vadd.f32 %v1961, %v1962
        %v1964 = vadd.f32 %v1916, %v1918
        %v1965 = vrot.slane %v1964, 4
        %v1966 = vadd.f32 %v1964, %v1965
        %v1967 = vrot.slane %v1966, 2
        %v1968 = vadd.f32 %v1966, %v1967
        %v1969 = vrot.slane %v1968, 1
        %v1970 = vadd.f32 %v1968, %v1969
        %v1971 = vadd.f32 %v1919, %v1921
        %v1972 = vrot.slane %v1971, 4
        %v1973 = vadd.f32 %v1971, %v1972
        %v1974 = vrot.slane %v1973, 2
        %v1975 = vadd.f32 %v1973, %v1974
        %v1976 = vrot.slane %v1975, 1
        %v1977 = vadd.f32 %v1975, %v1976
        %v1978 = vadd.f32 %v1920, %v1922
        %v1979 = vrot.slane %v1978, 4
        %v1980 = vadd.f32 %v1978, %v1979
        %v1981 = vrot.slane %v1980, 2
        %v1982 = vadd.f32 %v1980, %v1981
        %v1983 = vrot.slane %v1982, 1
        %v1984 = vadd.f32 %v1982, %v1983
        %v1985 = vadd.f32 %v1923, %v1925
        %v1986 = vrot.slane %v1985, 4
        %v1987 = vadd.f32 %v1985, %v1986
        %v1988 = vrot.slane %v1987, 2
        %v1989 = vadd.f32 %v1987, %v1988
        %v1990 = vrot.slane %v1989, 1
        %v1991 = vadd.f32 %v1989, %v1990
        %v1992 = vadd.f32 %v1924, %v1926
        %v1993 = vrot.slane %v1992, 4
        %v1994 = vadd.f32 %v1992, %v1993
        %v1995 = vrot.slane %v1994, 2
        %v1996 = vadd.f32 %v1994, %v1995
        %v1997 = vrot.slane %v1996, 1
        %v1998 = vadd.f32 %v1996, %v1997
        %v1999 = vadd.f32 %v1927, %v1929
        %v2000 = vrot.slane %v1999, 4
        %v2001 = vadd.f32 %v1999, %v2000
        %v2002 = vrot.slane %v2001, 2
        %v2003 = vadd.f32 %v2001, %v2002
        %v2004 = vrot.slane %v2003, 1
        %v2005 = vadd.f32 %v2003, %v2004
        %v2006 = vadd.f32 %v1928, %v1930
        %v2007 = vrot.slane %v2006, 4
        %v2008 = vadd.f32 %v2006, %v2007
        %v2009 = vrot.slane %v2008, 2
        %v2010 = vadd.f32 %v2008, %v2009
        %v2011 = vrot.slane %v2010, 1
        %v2012 = vadd.f32 %v2010, %v2011
        %v2013 = vadd.f32 %v1931, %v1933
        %v2014 = vrot.slane %v2013, 4
        %v2015 = vadd.f32 %v2013, %v2014
        %v2016 = vrot.slane %v2015, 2
        %v2017 = vadd.f32 %v2015, %v2016
        %v2018 = vrot.slane %v2017, 1
        %v2019 = vadd.f32 %v2017, %v2018
        %v2020 = vadd.f32 %v1932, %v1934
        %v2021 = vrot.slane %v2020, 4
        %v2022 = vadd.f32 %v2020, %v2021
        %v2023 = vrot.slane %v2022, 2
        %v2024 = vadd.f32 %v2022, %v2023
        %v2025 = vrot.slane %v2024, 1
        %v2026 = vadd.f32 %v2024, %v2025
        %v2027 = vadd.f32 %v1935, %v1937
        %v2028 = vrot.slane %v2027, 4
        %v2029 = vadd.f32 %v2027, %v2028
        %v2030 = vrot.slane %v2029, 2
        %v2031 = vadd.f32 %v2029, %v2030
        %v2032 = vrot.slane %v2031, 1
        %v2033 = vadd.f32 %v2031, %v2032
        %v2034 = vadd.f32 %v1936, %v1938
        %v2035 = vrot.slane %v2034, 4
        %v2036 = vadd.f32 %v2034, %v2035
        %v2037 = vrot.slane %v2036, 2
        %v2038 = vadd.f32 %v2036, %v2037
        %v2039 = vrot.slane %v2038, 1
        %v2040 = vadd.f32 %v2038, %v2039
        %v2041 = vadd.f32 %v1939, %v1941
        %v2042 = vrot.slane %v2041, 4
        %v2043 = vadd.f32 %v2041, %v2042
        %v2044 = vrot.slane %v2043, 2
        %v2045 = vadd.f32 %v2043, %v2044
        %v2046 = vrot.slane %v2045, 1
        %v2047 = vadd.f32 %v2045, %v2046
        %v2048 = vadd.f32 %v1940, %v1942
        %v2049 = vrot.slane %v2048, 4
        %v2050 = vadd.f32 %v2048, %v2049
        %v2051 = vrot.slane %v2050, 2
        %v2052 = vadd.f32 %v2050, %v2051
        %v2053 = vrot.slane %v2052, 1
        %v2054 = vadd.f32 %v2052, %v2053
        %v2055 = vadd.f32 %v1773, %v1949
        %v2056 = vadd.f32 %v1774, %v1956
        %v2057 = vadd.f32 %v1775, %v1963
        %v2058 = vadd.f32 %v1776, %v1970
        %v2059 = vadd.f32 %v1777, %v1977
        %v2060 = vadd.f32 %v1778, %v1984
        %v2061 = vadd.f32 %v1779, %v1991
        %v2062 = vadd.f32 %v1780, %v1998
        %v2063 = vadd.f32 %v1781, %v2005
        %v2064 = vadd.f32 %v1782, %v2012
        %v2065 = vadd.f32 %v1783, %v2019
        %v2066 = vadd.f32 %v1784, %v2026
        %v2067 = vadd.f32 %v1785, %v2033
        %v2068 = vadd.f32 %v1786, %v2040
        %v2069 = vadd.f32 %v1787, %v2047
        %v2070 = vadd.f32 %v1788, %v2054
        %v2071 = vlaneseq
        %v2072 = vshrl.u32 %v2071, 7
        %v2073 = vsub.s32 0, %v2072
        %v2074 = vrot.slane %v1336, %v2073
        %v2075 = vsub.f32 %v2074, %v1500
        %v2076 = vsub.f32 %v2074, %v1505
        %v2077 = vtanh.pop %v2075
        %v2078 = vtanh.pop %v2076
        %s2079 = scalar_lea.vmem [#allocation5], 576
        %v2080 = vld [vmem:[%s2079] sm:$0xff]
        %v2081 = vld [vmem:[%s2079 + $0x8] sm:$0xff]
        %v2082 = vld [vmem:[%s2079 + $0x10] sm:$0xff]
        %v2083 = vld [vmem:[%s2079 + $0x18] sm:$0xff]
        %v2084 = vld [vmem:[%s2079 + $0x20] sm:$0xff]
        %v2085 = vld [vmem:[%s2079 + $0x28] sm:$0xff]
        %v2086 = vld [vmem:[%s2079 + $0x30] sm:$0xff]
        %v2087 = vld [vmem:[%s2079 + $0x38] sm:$0xff]
        %v2088 = vld [vmem:[%s2079 + $0x40] sm:$0xff]
        %v2089 = vld [vmem:[%s2079 + $0x48] sm:$0xff]
        %v2090 = vld [vmem:[%s2079 + $0x50] sm:$0xff]
        %v2091 = vld [vmem:[%s2079 + $0x58] sm:$0xff]
        %v2092 = vld [vmem:[%s2079 + $0x60] sm:$0xff]
        %v2093 = vld [vmem:[%s2079 + $0x68] sm:$0xff]
        %v2094 = vld [vmem:[%s2079 + $0x70] sm:$0xff]
        %v2095 = vld [vmem:[%s2079 + $0x78] sm:$0xff]
        %v2096 = vld [vmem:[%s2079 + $0x80] sm:$0xff]
        %v2097 = vld [vmem:[%s2079 + $0x88] sm:$0xff]
        %v2098 = vld [vmem:[%s2079 + $0x90] sm:$0xff]
        %v2099 = vld [vmem:[%s2079 + $0x98] sm:$0xff]
        %v2100 = vld [vmem:[%s2079 + $0xa0] sm:$0xff]
        %v2101 = vld [vmem:[%s2079 + $0xa8] sm:$0xff]
        %v2102 = vld [vmem:[%s2079 + $0xb0] sm:$0xff]
        %v2103 = vld [vmem:[%s2079 + $0xb8] sm:$0xff]
        %v2104 = vld [vmem:[%s2079 + $0xc0] sm:$0xff]
        %v2105 = vld [vmem:[%s2079 + $0xc8] sm:$0xff]
        %v2106 = vld [vmem:[%s2079 + $0xd0] sm:$0xff]
        %v2107 = vld [vmem:[%s2079 + $0xd8] sm:$0xff]
        %v2108 = vld [vmem:[%s2079 + $0xe0] sm:$0xff]
        %v2109 = vld [vmem:[%s2079 + $0xe8] sm:$0xff]
        %v2110 = vld [vmem:[%s2079 + $0xf0] sm:$0xff]
        %v2111 = vld [vmem:[%s2079 + $0xf8] sm:$0xff]
        %v2112 = vld [vmem:[%s2079 + $0x100] sm:$0xff]
        %v2113 = vld [vmem:[%s2079 + $0x108] sm:$0xff]
        %v2114 = vld [vmem:[%s2079 + $0x110] sm:$0xff]
        %v2115 = vld [vmem:[%s2079 + $0x118] sm:$0xff]
        %2116 = vmatprep.subr.mxu0 %v2081
        %2117 = vmatpush1.msra.mxu0 %v2080
        %2118 = vmatprep.subr.mxu0 %v2083
        %2119 = vmatpush1.msra.mxu0 %v2082
        %2120 = vmatprep.subr.mxu0 %v2085
        %2121 = vmatpush1.msra.mxu0 %v2084
        %2122 = vmatprep.subr.mxu0 %v2087
        %2123 = vmatpush1.msra.mxu0 %v2086
        %2124 = vmatprep.subr.mxu0 %v2089
        %2125 = vmatpush1.msra.mxu0 %v2088
        %2126 = vmatprep.subr.mxu0 %v2091
        %2127 = vmatpush1.msra.mxu0 %v2090
        %2128 = vmatprep.subr.mxu0 %v2093
        %2129 = vmatpush1.msra.mxu0 %v2092
        %2130 = vmatprep.subr.mxu0 %v2095
        %2131 = vmatpush1.msra.mxu0 %v2094
        %2132 = vmatprep.subr.mxu0 %v2097
        %2133 = vmatpush1.msra.mxu0 %v2096
        %2134 = vmatprep.subr.mxu0 %v2099
        %2135 = vmatpush1.msra.mxu0 %v2098
        %2136 = vmatprep.subr.mxu0 %v2101
        %2137 = vmatpush1.msra.mxu0 %v2100
        %2138 = vmatprep.subr.mxu0 %v2103
        %2139 = vmatpush1.msra.mxu0 %v2102
        %2140 = vmatprep.subr.mxu0 %v2105
        %2141 = vmatpush1.msra.mxu0 %v2104
        %2142 = vmatprep.subr.mxu0 %v2107
        %2143 = vmatpush1.msra.mxu0 %v2106
        %2144 = vmatprep.subr.mxu0 %v2109
        %2145 = vmatpush1.msra.mxu0 %v2108
        %2146 = vmatprep.subr.mxu0 %v2111
        %2147 = vmatpush1.msra.mxu0 %v2110
        %2148 = vmatprep.subr.mxu0 0.0
        %2149 = vmatpush1.msra.mxu0 0.0
        %2150 = vmatprep.subr.mxu0 0.0
        %2151 = vmatpush1.msra.mxu0 0.0
        %2152 = vmatprep.subr.mxu0 0.0
        %2153 = vmatpush1.msra.mxu0 0.0
        %2154 = vmatprep.subr.mxu0 0.0
        %2155 = vmatpush1.msra.mxu0 0.0
        %2156 = vmatprep.subr.mxu0 0.0
        %2157 = vmatpush1.msra.mxu0 0.0
        %2158 = vmatprep.subr.mxu0 0.0
        %2159 = vmatpush1.msra.mxu0 0.0
        %2160 = vmatprep.subr.mxu0 0.0
        %2161 = vmatpush1.msra.mxu0 0.0
        %2162 = vmatprep.subr.mxu0 0.0
        %2163 = vmatpush1.msra.mxu0 0.0
        %2164 = vmatprep.subr.mxu0 0.0
        %2165 = vmatpush1.msra.mxu0 0.0
        %2166 = vmatprep.subr.mxu0 0.0
        %2167 = vmatpush1.msra.mxu0 0.0
        %2168 = vmatprep.subr.mxu0 0.0
        %2169 = vmatpush1.msra.mxu0 0.0
        %2170 = vmatprep.subr.mxu0 0.0
        %2171 = vmatpush1.msra.mxu0 0.0
        %2172 = vmatprep.subr.mxu0 0.0
        %2173 = vmatpush1.msra.mxu0 0.0
        %2174 = vmatprep.subr.mxu0 0.0
        %2175 = vmatpush1.msra.mxu0 0.0
        %2176 = vmatprep.subr.mxu0 0.0
        %2177 = vmatpush1.msra.mxu0 0.0
        %2178 = vmatprep.subr.mxu0 0.0
        %2179 = vmatpush1.msra.mxu0 0.0
        %2180 = vmatprep.mubr.f32.mxu0 0.0
        %2181 = vmatmul.mubr.f32.gmra.mrb[0].mxu0 %v2077
        %v2182 = vpop.f32.mrb[0].mxu0
        %v2183 = vadd.f32 %v2112, %v2182
        %v2184 = vpop.f32.mrb[0].mxu0
        %v2185 = vadd.f32 %v2113, %v2184
        %2186 = vmatprep.mubr.f32.mxu0 0.0
        %2187 = vmatmul.mubr.f32.gmra.mrb[0].mxu0 %v2078
        %v2188 = vpop.f32.mrb[0].mxu0
        %v2189 = vadd.f32 %v2114, %v2188
        %v2190 = vpop.f32.mrb[0].mxu0
        %v2191 = vadd.f32 %v2115, %v2190
        %2192 = vdwg.mxu0
        %v2193 = vmul.f32 %v868, %v2183
        %v2194 = vmul.f32 %v870, %v2185
        %v2195 = vmul.f32 %v874, %v2189
        %v2196 = vmul.f32 %v876, %v2191
        %v2197 = vmul.f32 %v880, %v2183
        %v2198 = vmul.f32 %v882, %v2185
        %v2199 = vmul.f32 %v886, %v2189
        %v2200 = vmul.f32 %v888, %v2191
        %v2201 = vmul.f32 %v892, %v2183
        %v2202 = vmul.f32 %v894, %v2185
        %v2203 = vmul.f32 %v898, %v2189
        %v2204 = vmul.f32 %v900, %v2191
        %v2205 = vmul.f32 %v904, %v2183
        %v2206 = vmul.f32 %v906, %v2185
        %v2207 = vmul.f32 %v910, %v2189
        %v2208 = vmul.f32 %v912, %v2191
        %v2209 = vmul.f32 %v916, %v2183
        %v2210 = vmul.f32 %v918, %v2185
        %v2211 = vmul.f32 %v922, %v2189
        %v2212 = vmul.f32 %v924, %v2191
        %v2213 = vmul.f32 %v928, %v2183
        %v2214 = vmul.f32 %v930, %v2185
        %v2215 = vmul.f32 %v934, %v2189
        %v2216 = vmul.f32 %v936, %v2191
        %v2217 = vmul.f32 %v940, %v2183
        %v2218 = vmul.f32 %v942, %v2185
        %v2219 = vmul.f32 %v946, %v2189
        %v2220 = vmul.f32 %v948, %v2191
        %v2221 = vmul.f32 %v952, %v2183
        %v2222 = vmul.f32 %v954, %v2185
        %v2223 = vmul.f32 %v958, %v2189
        %v2224 = vmul.f32 %v960, %v2191
        %v2225 = vadd.f32 %v2193, %v2195
        %v2226 = vrot.slane %v2225, 4
        %v2227 = vadd.f32 %v2225, %v2226
        %v2228 = vrot.slane %v2227, 2
        %v2229 = vadd.f32 %v2227, %v2228
        %v2230 = vrot.slane %v2229, 1
        %v2231 = vadd.f32 %v2229, %v2230
        %v2232 = vadd.f32 %v2194, %v2196
        %v2233 = vrot.slane %v2232, 4
        %v2234 = vadd.f32 %v2232, %v2233
        %v2235 = vrot.slane %v2234, 2
        %v2236 = vadd.f32 %v2234, %v2235
        %v2237 = vrot.slane %v2236, 1
        %v2238 = vadd.f32 %v2236, %v2237
        %v2239 = vadd.f32 %v2197, %v2199
        %v2240 = vrot.slane %v2239, 4
        %v2241 = vadd.f32 %v2239, %v2240
        %v2242 = vrot.slane %v2241, 2
        %v2243 = vadd.f32 %v2241, %v2242
        %v2244 = vrot.slane %v2243, 1
        %v2245 = vadd.f32 %v2243, %v2244
        %v2246 = vadd.f32 %v2198, %v2200
        %v2247 = vrot.slane %v2246, 4
        %v2248 = vadd.f32 %v2246, %v2247
        %v2249 = vrot.slane %v2248, 2
        %v2250 = vadd.f32 %v2248, %v2249
        %v2251 = vrot.slane %v2250, 1
        %v2252 = vadd.f32 %v2250, %v2251
        %v2253 = vadd.f32 %v2201, %v2203
        %v2254 = vrot.slane %v2253, 4
        %v2255 = vadd.f32 %v2253, %v2254
        %v2256 = vrot.slane %v2255, 2
        %v2257 = vadd.f32 %v2255, %v2256
        %v2258 = vrot.slane %v2257, 1
        %v2259 = vadd.f32 %v2257, %v2258
        %v2260 = vadd.f32 %v2202, %v2204
        %v2261 = vrot.slane %v2260, 4
        %v2262 = vadd.f32 %v2260, %v2261
        %v2263 = vrot.slane %v2262, 2
        %v2264 = vadd.f32 %v2262, %v2263
        %v2265 = vrot.slane %v2264, 1
        %v2266 = vadd.f32 %v2264, %v2265
        %v2267 = vadd.f32 %v2205, %v2207
        %v2268 = vrot.slane %v2267, 4
        %v2269 = vadd.f32 %v2267, %v2268
        %v2270 = vrot.slane %v2269, 2
        %v2271 = vadd.f32 %v2269, %v2270
        %v2272 = vrot.slane %v2271, 1
        %v2273 = vadd.f32 %v2271, %v2272
        %v2274 = vadd.f32 %v2206, %v2208
        %v2275 = vrot.slane %v2274, 4
        %v2276 = vadd.f32 %v2274, %v2275
        %v2277 = vrot.slane %v2276, 2
        %v2278 = vadd.f32 %v2276, %v2277
        %v2279 = vrot.slane %v2278, 1
        %v2280 = vadd.f32 %v2278, %v2279
        %v2281 = vadd.f32 %v2209, %v2211
        %v2282 = vrot.slane %v2281, 4
        %v2283 = vadd.f32 %v2281, %v2282
        %v2284 = vrot.slane %v2283, 2
        %v2285 = vadd.f32 %v2283, %v2284
        %v2286 = vrot.slane %v2285, 1
        %v2287 = vadd.f32 %v2285, %v2286
        %v2288 = vadd.f32 %v2210, %v2212
        %v2289 = vrot.slane %v2288, 4
        %v2290 = vadd.f32 %v2288, %v2289
        %v2291 = vrot.slane %v2290, 2
        %v2292 = vadd.f32 %v2290, %v2291
        %v2293 = vrot.slane %v2292, 1
        %v2294 = vadd.f32 %v2292, %v2293
        %v2295 = vadd.f32 %v2213, %v2215
        %v2296 = vrot.slane %v2295, 4
        %v2297 = vadd.f32 %v2295, %v2296
        %v2298 = vrot.slane %v2297, 2
        %v2299 = vadd.f32 %v2297, %v2298
        %v2300 = vrot.slane %v2299, 1
        %v2301 = vadd.f32 %v2299, %v2300
        %v2302 = vadd.f32 %v2214, %v2216
        %v2303 = vrot.slane %v2302, 4
        %v2304 = vadd.f32 %v2302, %v2303
        %v2305 = vrot.slane %v2304, 2
        %v2306 = vadd.f32 %v2304, %v2305
        %v2307 = vrot.slane %v2306, 1
        %v2308 = vadd.f32 %v2306, %v2307
        %v2309 = vadd.f32 %v2217, %v2219
        %v2310 = vrot.slane %v2309, 4
        %v2311 = vadd.f32 %v2309, %v2310
        %v2312 = vrot.slane %v2311, 2
        %v2313 = vadd.f32 %v2311, %v2312
        %v2314 = vrot.slane %v2313, 1
        %v2315 = vadd.f32 %v2313, %v2314
        %v2316 = vadd.f32 %v2218, %v2220
        %v2317 = vrot.slane %v2316, 4
        %v2318 = vadd.f32 %v2316, %v2317
        %v2319 = vrot.slane %v2318, 2
        %v2320 = vadd.f32 %v2318, %v2319
        %v2321 = vrot.slane %v2320, 1
        %v2322 = vadd.f32 %v2320, %v2321
        %v2323 = vadd.f32 %v2221, %v2223
        %v2324 = vrot.slane %v2323, 4
        %v2325 = vadd.f32 %v2323, %v2324
        %v2326 = vrot.slane %v2325, 2
        %v2327 = vadd.f32 %v2325, %v2326
        %v2328 = vrot.slane %v2327, 1
        %v2329 = vadd.f32 %v2327, %v2328
        %v2330 = vadd.f32 %v2222, %v2224
        %v2331 = vrot.slane %v2330, 4
        %v2332 = vadd.f32 %v2330, %v2331
        %v2333 = vrot.slane %v2332, 2
        %v2334 = vadd.f32 %v2332, %v2333
        %v2335 = vrot.slane %v2334, 1
        %v2336 = vadd.f32 %v2334, %v2335
        %v2337 = vadd.f32 %v2055, %v2231
        %v2338 = vadd.f32 %v2056, %v2238
        %v2339 = vadd.f32 %v2057, %v2245
        %v2340 = vadd.f32 %v2058, %v2252
        %v2341 = vadd.f32 %v2059, %v2259
        %v2342 = vadd.f32 %v2060, %v2266
        %v2343 = vadd.f32 %v2061, %v2273
        %v2344 = vadd.f32 %v2062, %v2280
        %v2345 = vadd.f32 %v2063, %v2287
        %v2346 = vadd.f32 %v2064, %v2294
        %v2347 = vadd.f32 %v2065, %v2301
        %v2348 = vadd.f32 %v2066, %v2308
        %v2349 = vadd.f32 %v2067, %v2315
        %v2350 = vadd.f32 %v2068, %v2322
        %v2351 = vadd.f32 %v2069, %v2329
        %v2352 = vadd.f32 %v2070, %v2336
        %v2355 = vrot.slane %v1107, 1
        %v2356 = vrot.slane %v1109, 1
        %v2357 = vrot.slane %v1107, 2
        %v2358 = vrot.slane %v1109, 2
        %v2359 = vrot.slane %v1107, 3
        %v2360 = vrot.slane %v1109, 3
        %v2361 = vrot.slane %v1107, 4
        %v2362 = vrot.slane %v1109, 4
        %v2363 = vrot.slane %v1107, 5
        %v2364 = vrot.slane %v1109, 5
        %v2365 = vrot.slane %v1107, 6
        %v2366 = vrot.slane %v1109, 6
        %v2367 = vrot.slane %v1107, 7
        %v2368 = vrot.slane %v1109, 7
        %v2385 = vadd.f32 %v2337, %v1107
        %v2386 = vadd.f32 %v2338, %v1109
        %v2387 = vadd.f32 %v2339, %v2355
        %v2388 = vadd.f32 %v2340, %v2356
        %v2389 = vadd.f32 %v2341, %v2357
        %v2390 = vadd.f32 %v2342, %v2358
        %v2391 = vadd.f32 %v2343, %v2359
        %v2392 = vadd.f32 %v2344, %v2360
        %v2393 = vadd.f32 %v2345, %v2361
        %v2394 = vadd.f32 %v2346, %v2362
        %v2395 = vadd.f32 %v2347, %v2363
        %v2396 = vadd.f32 %v2348, %v2364
        %v2397 = vadd.f32 %v2349, %v2365
        %v2398 = vadd.f32 %v2350, %v2366
        %v2399 = vadd.f32 %v2351, %v2367
        %v2400 = vadd.f32 %v2352, %v2368
        %v2401 = vmax.f32 %v2385, 0.0
        %v2402 = vmax.f32 %v2386, 0.0
        %v2403 = vmax.f32 %v2387, 0.0
        %v2404 = vmax.f32 %v2388, 0.0
        %v2405 = vmax.f32 %v2389, 0.0
        %v2406 = vmax.f32 %v2390, 0.0
        %v2407 = vmax.f32 %v2391, 0.0
        %v2408 = vmax.f32 %v2392, 0.0
        %v2409 = vmax.f32 %v2393, 0.0
        %v2410 = vmax.f32 %v2394, 0.0
        %v2411 = vmax.f32 %v2395, 0.0
        %v2412 = vmax.f32 %v2396, 0.0
        %v2413 = vmax.f32 %v2397, 0.0
        %v2414 = vmax.f32 %v2398, 0.0
        %v2415 = vmax.f32 %v2399, 0.0
        %v2416 = vmax.f32 %v2400, 0.0
        %v2417 = vld [vmem:[#allocation7] sm:$0xff]
        %v2418 = vld [vmem:[#allocation7 + $0x8] sm:$0xff]
        %v2419 = vld [vmem:[#allocation7 + $0x10] sm:$0xff]
        %v2420 = vld [vmem:[#allocation7 + $0x18] sm:$0xff]
        %v2421 = vld [vmem:[#allocation7 + $0x20] sm:$0xff]
        %v2422 = vld [vmem:[#allocation7 + $0x28] sm:$0xff]
        %v2423 = vld [vmem:[#allocation7 + $0x30] sm:$0xff]
        %v2424 = vld [vmem:[#allocation7 + $0x38] sm:$0xff]
        %v2425 = vld [vmem:[#allocation7 + $0x40] sm:$0xff]
        %v2426 = vld [vmem:[#allocation7 + $0x48] sm:$0xff]
        %v2427 = vld [vmem:[#allocation7 + $0x50] sm:$0xff]
        %v2428 = vld [vmem:[#allocation7 + $0x58] sm:$0xff]
        %v2429 = vld [vmem:[#allocation7 + $0x60] sm:$0xff]
        %v2430 = vld [vmem:[#allocation7 + $0x68] sm:$0xff]
        %v2431 = vld [vmem:[#allocation7 + $0x70] sm:$0xff]
        %v2432 = vld [vmem:[#allocation7 + $0x78] sm:$0xff]
        %v2433 = vld [vmem:[#allocation7 + $0x80] sm:$0xff]
        %v2434 = vld [vmem:[#allocation7 + $0x88] sm:$0xff]
        %v2435 = vld [vmem:[#allocation7 + $0x90] sm:$0xff]
        %v2436 = vld [vmem:[#allocation7 + $0x98] sm:$0xff]
        %v2437 = vld [vmem:[#allocation7 + $0xa0] sm:$0xff]
        %v2438 = vld [vmem:[#allocation7 + $0xa8] sm:$0xff]
        %v2439 = vld [vmem:[#allocation7 + $0xb0] sm:$0xff]
        %v2440 = vld [vmem:[#allocation7 + $0xb8] sm:$0xff]
        %v2441 = vld [vmem:[#allocation7 + $0xc0] sm:$0xff]
        %v2442 = vld [vmem:[#allocation7 + $0xc8] sm:$0xff]
        %v2443 = vld [vmem:[#allocation7 + $0xd0] sm:$0xff]
        %v2444 = vld [vmem:[#allocation7 + $0xd8] sm:$0xff]
        %v2445 = vld [vmem:[#allocation7 + $0xe0] sm:$0xff]
        %v2446 = vld [vmem:[#allocation7 + $0xe8] sm:$0xff]
        %v2447 = vld [vmem:[#allocation7 + $0xf0] sm:$0xff]
        %v2448 = vld [vmem:[#allocation7 + $0xf8] sm:$0xff]
        %v2449 = vld [vmem:[#allocation7 + $0x100] sm:$0xff]
        %v2450 = vld [vmem:[#allocation7 + $0x108] sm:$0xff]
        %v2451 = vld [vmem:[#allocation7 + $0x110] sm:$0xff]
        %v2452 = vld [vmem:[#allocation7 + $0x118] sm:$0xff]
        %v2453 = vld [vmem:[#allocation7 + $0x120] sm:$0xff]
        %v2454 = vld [vmem:[#allocation7 + $0x128] sm:$0xff]
        %v2455 = vld [vmem:[#allocation7 + $0x130] sm:$0xff]
        %v2456 = vld [vmem:[#allocation7 + $0x138] sm:$0xff]
        %v2457 = vld [vmem:[#allocation7 + $0x140] sm:$0xff]
        %v2458 = vld [vmem:[#allocation7 + $0x148] sm:$0xff]
        %v2459 = vld [vmem:[#allocation7 + $0x150] sm:$0xff]
        %v2460 = vld [vmem:[#allocation7 + $0x158] sm:$0xff]
        %v2461 = vld [vmem:[#allocation7 + $0x160] sm:$0xff]
        %v2462 = vld [vmem:[#allocation7 + $0x168] sm:$0xff]
        %v2463 = vld [vmem:[#allocation7 + $0x170] sm:$0xff]
        %v2464 = vld [vmem:[#allocation7 + $0x178] sm:$0xff]
        %v2465 = vld [vmem:[#allocation7 + $0x180] sm:$0xff]
        %v2466 = vld [vmem:[#allocation7 + $0x188] sm:$0xff]
        %v2467 = vld [vmem:[#allocation7 + $0x190] sm:$0xff]
        %v2468 = vld [vmem:[#allocation7 + $0x198] sm:$0xff]
        %v2469 = vld [vmem:[#allocation7 + $0x1a0] sm:$0xff]
        %v2470 = vld [vmem:[#allocation7 + $0x1a8] sm:$0xff]
        %v2471 = vld [vmem:[#allocation7 + $0x1b0] sm:$0xff]
        %v2472 = vld [vmem:[#allocation7 + $0x1b8] sm:$0xff]
        %v2473 = vld [vmem:[#allocation7 + $0x1c0] sm:$0xff]
        %v2474 = vld [vmem:[#allocation7 + $0x1c8] sm:$0xff]
        %v2475 = vld [vmem:[#allocation7 + $0x1d0] sm:$0xff]
        %v2476 = vld [vmem:[#allocation7 + $0x1d8] sm:$0xff]
        %v2477 = vld [vmem:[#allocation7 + $0x1e0] sm:$0xff]
        %v2478 = vld [vmem:[#allocation7 + $0x1e8] sm:$0xff]
        %v2479 = vld [vmem:[#allocation7 + $0x1f0] sm:$0xff]
        %v2480 = vld [vmem:[#allocation7 + $0x1f8] sm:$0xff]
        %v2497 = vrot.slane %v2403, 7
        %vm2498 = vcmask 1041409
        %v2499 = vsel %vm2498, %v2497, %v2401
        %v2500 = vrot.slane %v2405, 6
        %vm2501 = vcmask 1042434
        %v2502 = vsel %vm2501, %v2500, %v2499
        %v2503 = vrot.slane %v2407, 5
        %vm2504 = vcmask 1043459
        %v2505 = vsel %vm2504, %v2503, %v2502
        %v2506 = vrot.slane %v2409, 4
        %vm2507 = vcmask 1044484
        %v2508 = vsel %vm2507, %v2506, %v2505
        %v2509 = vrot.slane %v2411, 3
        %vm2510 = vcmask 1045509
        %v2511 = vsel %vm2510, %v2509, %v2508
        %v2512 = vrot.slane %v2413, 2
        %vm2513 = vcmask 1046534
        %v2514 = vsel %vm2513, %v2512, %v2511
        %v2515 = vrot.slane %v2415, 1
        %vm2516 = vcmask 1047559
        %v2517 = vsel %vm2516, %v2515, %v2514
        %v2518 = vrot.slane %v2404, 7
        %v2519 = vsel %vm2498, %v2518, %v2402
        %v2520 = vrot.slane %v2406, 6
        %v2521 = vsel %vm2501, %v2520, %v2519
        %v2522 = vrot.slane %v2408, 5
        %v2523 = vsel %vm2504, %v2522, %v2521
        %v2524 = vrot.slane %v2410, 4
        %v2525 = vsel %vm2507, %v2524, %v2523
        %v2526 = vrot.slane %v2412, 3
        %v2527 = vsel %vm2510, %v2526, %v2525
        %v2528 = vrot.slane %v2414, 2
        %v2529 = vsel %vm2513, %v2528, %v2527
        %v2530 = vrot.slane %v2416, 1
        %v2531 = vsel %vm2516, %v2530, %v2529
        %2534 = vmatprep.subr.mxu0 %v2418
        %2535 = vmatpush1.msra.mxu0 %v2417
        %2536 = vmatprep.subr.mxu0 %v2420
        %2537 = vmatpush1.msra.mxu0 %v2419
        %2538 = vmatprep.subr.mxu0 %v2422
        %2539 = vmatpush1.msra.mxu0 %v2421
        %2540 = vmatprep.subr.mxu0 %v2424
        %2541 = vmatpush1.msra.mxu0 %v2423
        %2542 = vmatprep.subr.mxu0 %v2426
        %2543 = vmatpush1.msra.mxu0 %v2425
        %2544 = vmatprep.subr.mxu0 %v2428
        %2545 = vmatpush1.msra.mxu0 %v2427
        %2546 = vmatprep.subr.mxu0 %v2430
        %2547 = vmatpush1.msra.mxu0 %v2429
        %2548 = vmatprep.subr.mxu0 %v2432
        %2549 = vmatpush1.msra.mxu0 %v2431
        %2550 = vmatprep.subr.mxu0 %v2434
        %2551 = vmatpush1.msra.mxu0 %v2433
        %2552 = vmatprep.subr.mxu0 %v2436
        %2553 = vmatpush1.msra.mxu0 %v2435
        %2554 = vmatprep.subr.mxu0 %v2438
        %2555 = vmatpush1.msra.mxu0 %v2437
        %2556 = vmatprep.subr.mxu0 %v2440
        %2557 = vmatpush1.msra.mxu0 %v2439
        %2558 = vmatprep.subr.mxu0 %v2442
        %2559 = vmatpush1.msra.mxu0 %v2441
        %2560 = vmatprep.subr.mxu0 %v2444
        %2561 = vmatpush1.msra.mxu0 %v2443
        %2562 = vmatprep.subr.mxu0 %v2446
        %2563 = vmatpush1.msra.mxu0 %v2445
        %2564 = vmatprep.subr.mxu0 %v2448
        %2565 = vmatpush1.msra.mxu0 %v2447
        %2566 = vmatprep.subr.mxu0 %v2450
        %2567 = vmatpush1.msra.mxu0 %v2449
        %2568 = vmatprep.subr.mxu0 %v2452
        %2569 = vmatpush1.msra.mxu0 %v2451
        %2570 = vmatprep.subr.mxu0 %v2454
        %2571 = vmatpush1.msra.mxu0 %v2453
        %2572 = vmatprep.subr.mxu0 %v2456
        %2573 = vmatpush1.msra.mxu0 %v2455
        %2574 = vmatprep.subr.mxu0 %v2458
        %2575 = vmatpush1.msra.mxu0 %v2457
        %2576 = vmatprep.subr.mxu0 %v2460
        %2577 = vmatpush1.msra.mxu0 %v2459
        %2578 = vmatprep.subr.mxu0 %v2462
        %2579 = vmatpush1.msra.mxu0 %v2461
        %2580 = vmatprep.subr.mxu0 %v2464
        %2581 = vmatpush1.msra.mxu0 %v2463
        %2582 = vmatprep.subr.mxu0 %v2466
        %2583 = vmatpush1.msra.mxu0 %v2465
        %2584 = vmatprep.subr.mxu0 %v2468
        %2585 = vmatpush1.msra.mxu0 %v2467
        %2586 = vmatprep.subr.mxu0 %v2470
        %2587 = vmatpush1.msra.mxu0 %v2469
        %2588 = vmatprep.subr.mxu0 %v2472
        %2589 = vmatpush1.msra.mxu0 %v2471
        %2590 = vmatprep.subr.mxu0 %v2474
        %2591 = vmatpush1.msra.mxu0 %v2473
        %2592 = vmatprep.subr.mxu0 %v2476
        %2593 = vmatpush1.msra.mxu0 %v2475
        %2594 = vmatprep.subr.mxu0 %v2478
        %2595 = vmatpush1.msra.mxu0 %v2477
        %2596 = vmatprep.subr.mxu0 %v2480
        %2597 = vmatpush1.msra.mxu0 %v2479
        %2598 = vmatprep.mubr.f32.mxu0 %v2531
        %2599 = vmatmul.mubr.f32.gmra.mrb[0].mxu0 %v2517
        %v2600 = vpop.f32.mrb[0].mxu0
        %v2601 = vadd.f32 %v1182, %v2600
        %v2602 = vpop.f32.mrb[0].mxu0
        %v2603 = vadd.f32 %v1184, %v2602
        %2604 = vdwg.mxu0
        %v2605 = vmax.f32 %v2601, 0.0
        %v2606 = vmax.f32 %v2603, 0.0
        %2607 = vst [vmem:[%s372] sm:$0xff] %v2605
        %2608 = vst [vmem:[%s372 + $0x8] sm:$0xff] %v2606
        %s2609 = sand.u32 %s215, 1
        %s2610 = scalar_lea.sflag [#allocation4], %s2609
        %s2611 = sand.u32 %s215, 1
        %s2612 = smul.addr %s2611, 16
        %s2613 = scalar_lea.vmem [#allocation8], %s2612
        // Predicated region
        $region65: #{tpu_custom_call.1} parent=51 // pred_check
          %p2614 = pneg %p225
        $region66: #{tpu_custom_call.1} parent=51 // pred_check_branch
          %2616 = sbr.rel (%p2614) target = $region68
        $region67: #{tpu_custom_call.1} parent=51 // pred_region
          %s2618 = ssub.s32 256, 256
          %2619 = vsyncadd %s2610, %s2618
          %s2620 = smul.addr %s24, 2
          %s2621 = smul.addr %s2620, 128
          %s2622 = scalar_lea.hbm %s8, %s2621
          %s2624 = sshll.u32 %s2613, 4
          %s2625 = int_to_ptr.vmem [resolvable:$true] %s2624
          %2627 = dma.vmem_to_hbm [thread:$0]  %s2625, 256, %s2622, %s2610
        $region68: #{tpu_custom_call.1} parent=51 // pred_fallthru
          _
      $region52: #{tpu_custom_call.1} parent=5 // pred_fallthru
        _
      %p2628 = scmp.le.s32.totalorder 2, %s19
      // Predicated region
      $region69: #{tpu_custom_call.1} parent=5 // pred_check
        %p2629 = pneg %p2628
      $region70: #{tpu_custom_call.1} parent=5 // pred_check_branch
        %2631 = sbr.rel (%p2629) target = $region72
      $region71: #{tpu_custom_call.1} parent=5 // pred_region
        %s2632 = ssub.s32 %s19, 2
        // Predicated region
        $region73: #{tpu_custom_call.1} parent=71 // pred_check
          %p2633 = pneg %p231
        $region74: #{tpu_custom_call.1} parent=71 // pred_check_branch
          %2635 = sbr.rel (%p2633) target = $region76
        $region75: #{tpu_custom_call.1} parent=71 // pred_region
          %s2636 = sand.u32 %s216, 1
          %s2637 = scalar_lea.sflag [#allocation4], %s2636
          %s2638 = sand.u32 %s216, 1
          %s2639 = smul.addr %s2638, 16
          %s2640 = scalar_lea.vmem [#allocation8], %s2639
          %2641 = dma.done %s2637, 256
        $region76: #{tpu_custom_call.1} parent=71 // pred_fallthru
          _
      $region72: #{tpu_custom_call.1} parent=5 // pred_fallthru
        _
    $region6: #{tpu_custom_call.1} parent=1 // loop_footer
      %s23 = sadd.s32 1, %s19
    $region7: #{tpu_custom_call.1} parent=1 // loop_footer_branch
      %18 = sbr.rel target = $region3
    $region8: #{tpu_custom_call.1} parent=1 // loop_exit
      _
    %2642 = vsyncpa [#allocation3], 1
    %s2643 = scalar_lea.sflag [#allocation3], 1
    %2644 = vsyncpa %s2643, 1
    %2645 = vsyncpa [#allocation6], 1
    %2646 = vsyncpa [#allocation4], 1
    %s2647 = scalar_lea.sflag [#allocation4], 1
    %2648 = vsyncpa %s2647, 1

</llo_original>
